<compile_context>
chip_gen: v7x
topology: tpu7x:2x2x1
jax: 0.10.0
libtpu: 0.0.40
codegen_flags: <defaults>
</compile_context>

<pallas_src>
import jax
import jax.numpy as jnp
from jax import lax
from jax.experimental import pallas as pl
from jax.experimental.pallas import tpu as pltpu

ENCODE_LENGTH = 16
IN_DIM = 28 * 28          # 784
HID = 256

FUSED_MAX_N = 256         # batches up to this size use the single fused kernel
HASH_TI = 256             # i-tile rows for the chained hash grid
HASH_CHUNK = 256          # j-chunk columns (lanes) for the chained hash grid
_VMEM_LIMIT = 32 * 1024 * 1024


def _round_up(n, m):
    return ((n + m - 1) // m) * m


# ==========================================================================
# Kernels
# ==========================================================================
def encoder_kernel(x_ref, w1_ref, b1_ref, w2_ref, b2_ref, h_ref):
    # (tm, 784) @ (784, 256) -> ReLU -> (tm, 256) @ (256, 16)
    x = x_ref[...].astype(jnp.bfloat16)
    z1 = jnp.dot(x, w1_ref[...], preferred_element_type=jnp.float32) + b1_ref[...]
    z1 = jnp.maximum(z1, 0.0).astype(jnp.bfloat16)
    h_ref[...] = jnp.dot(z1, w2_ref[...],
                         preferred_element_type=jnp.float32) + b2_ref[...]


def decoder_kernel(b_ref, w3_ref, b3_ref, w4_ref, b4_ref, xr_ref):
    # (tm, 16) @ (16, 256) -> ReLU -> (tm, 256) @ (256, 784) -> sigmoid
    bb = b_ref[...].astype(jnp.bfloat16)
    z2 = jnp.dot(bb, w3_ref[...], preferred_element_type=jnp.float32) + b3_ref[...]
    z2 = jnp.maximum(z2, 0.0).astype(jnp.bfloat16)
    logits = jnp.dot(z2, w4_ref[...],
                     preferred_element_type=jnp.float32) + b4_ref[...]
    # single-EUP-op sigmoid
    xr_ref[...] = 0.5 * (jnp.tanh(0.5 * logits) + 1.0)


def _make_hash_kernel(true_n, ti, chunk):
    """BiHalf hash, chained path.

    rank[i,d] = #{ j < true_n : h[j,d] > h[i,d]  OR (h[j,d]==h[i,d] AND j < i) }
    b[i,d]    = +1 if rank[i,d] < true_n//2 else -1

    Grid: (i-tiles, j-chunks).  hi_ref is the (ti, 16) row tile, hj_ref is the
    (16, chunk) slice of h^T (batch on lanes => lane-dense compares).  rank is
    accumulated in a VMEM scratch across the j ("arbitrary") axis.
    """
    half = true_n // 2
    L = ENCODE_LENGTH

    def kernel(hi_ref, hj_ref, b_ref, rank_ref):
        j = pl.program_id(1)

        @pl.when(j == 0)
        def _():
            rank_ref[...] = jnp.zeros_like(rank_ref)

        i0 = pl.program_id(0) * ti
        j0 = j * chunk
        i_idx = i0 + lax.broadcasted_iota(jnp.int32, (ti, 1), 0)      # (ti,1)
        j_idx = j0 + lax.broadcasted_iota(jnp.int32, (1, chunk), 1)   # (1,chunk)
        valid_j = j_idx < true_n                                      # (1,chunk)
        tie = j_idx < i_idx                                           # (ti,chunk)

        hi = hi_ref[...]                                              # (ti, L)
        hj = hj_ref[...]                                              # (L, chunk)

        counts = []
        for d in range(L):                                            # static, 16
            hi_d = hi[:, d:d + 1]                                     # (ti, 1)
            hj_d = hj[d:d + 1, :]                                     # (1, chunk)
            beats = ((hj_d > hi_d) | ((hj_d == hi_d) & tie)) & valid_j
            counts.append(jnp.sum(beats.astype(jnp.int32), axis=1,
                                  keepdims=True))                     # (ti, 1)
        rank_ref[...] += jnp.concatenate(counts, axis=1)              # (ti, L)

        @pl.when(j == pl.num_programs(1) - 1)
        def _():
            b_ref[...] = jnp.where(rank_ref[...] < half, 1.0,
                                   -1.0).astype(jnp.float32)

    return kernel


def fused_kernel(x_ref, w1_ref, b1_ref, w2_ref, b2_ref,
                 w3_ref, b3_ref, w4_ref, b4_ref,
                 xr_ref, h_ref, b_ref):
    """Whole forward for small batches: encoder -> hash -> decoder in VMEM."""
    n = x_ref.shape[0]
    half = n // 2

    # ---- encoder ----
    x = x_ref[...].astype(jnp.bfloat16)
    z1 = jnp.dot(x, w1_ref[...], preferred_element_type=jnp.float32) + b1_ref[...]
    z1 = jnp.maximum(z1, 0.0).astype(jnp.bfloat16)
    h = jnp.dot(z1, w2_ref[...], preferred_element_type=jnp.float32) + b2_ref[...]
    h_ref[...] = h                                                    # (n, 16)

    # ---- BiHalf hash (full batch, single shot) ----
    i_idx = lax.broadcasted_iota(jnp.int32, (n, 1, 1), 0)
    j_idx = lax.broadcasted_iota(jnp.int32, (1, n, 1), 1)
    hj = h[None, :, :]                                                # (1, n, 16)
    hi = h[:, None, :]                                                # (n, 1, 16)
    beats = (hj > hi) | ((hj == hi) & (j_idx < i_idx))
    rank = jnp.sum(beats.astype(jnp.int32), axis=1)                   # (n, 16)
    b = jnp.where(rank < half, 1.0, -1.0).astype(jnp.float32)
    b_ref[...] = b

    # ---- decoder ----
    z2 = jnp.dot(b.astype(jnp.bfloat16), w3_ref[...],
                 preferred_element_type=jnp.float32) + b3_ref[...]
    z2 = jnp.maximum(z2, 0.0).astype(jnp.bfloat16)
    logits = jnp.dot(z2, w4_ref[...],
                     preferred_element_type=jnp.float32) + b4_ref[...]
    xr_ref[...] = 0.5 * (jnp.tanh(0.5 * logits) + 1.0)


# ==========================================================================
# pallas_call wrappers
# ==========================================================================
def _encoder_call(x_p, w1, b1, w2, b2, tm):
    n_pad = x_p.shape[0]
    flops = 2 * n_pad * (IN_DIM * HID + HID * ENCODE_LENGTH)
    bytes_accessed = (4 * n_pad * (IN_DIM + ENCODE_LENGTH)
                      + 2 * (w1.size + w2.size) + 4 * (b1.size + b2.size))
    return pl.pallas_call(
        encoder_kernel,
        out_shape=jax.ShapeDtypeStruct((n_pad, ENCODE_LENGTH), jnp.float32),
        grid=(n_pad // tm,),
        in_specs=[
            pl.BlockSpec((tm, IN_DIM), lambda i: (i, 0)),
            pl.BlockSpec((IN_DIM, HID), lambda i: (0, 0)),
            pl.BlockSpec((1, HID), lambda i: (0, 0)),
            pl.BlockSpec((HID, ENCODE_LENGTH), lambda i: (0, 0)),
            pl.BlockSpec((1, ENCODE_LENGTH), lambda i: (0, 0)),
        ],
        out_specs=pl.BlockSpec((tm, ENCODE_LENGTH), lambda i: (i, 0)),
        compiler_params=pltpu.CompilerParams(
            dimension_semantics=("parallel",),
            vmem_limit_bytes=_VMEM_LIMIT),
        cost_estimate=pl.CostEstimate(flops=flops, transcendentals=0,
                                      bytes_accessed=bytes_accessed),
    )(x_p, w1, b1, w2, b2)


def _decoder_call(b_full, w3, b3, w4, b4, tm):
    n_pad = b_full.shape[0]
    flops = 2 * n_pad * (ENCODE_LENGTH * HID + HID * IN_DIM)
    bytes_accessed = (4 * n_pad * (ENCODE_LENGTH + IN_DIM)
                      + 2 * (w3.size + w4.size) + 4 * (b3.size + b4.size))
    return pl.pallas_call(
        decoder_kernel,
        out_shape=jax.ShapeDtypeStruct((n_pad, IN_DIM), jnp.float32),
        grid=(n_pad // tm,),
        in_specs=[
            pl.BlockSpec((tm, ENCODE_LENGTH), lambda i: (i, 0)),
            pl.BlockSpec((ENCODE_LENGTH, HID), lambda i: (0, 0)),
            pl.BlockSpec((1, HID), lambda i: (0, 0)),
            pl.BlockSpec((HID, IN_DIM), lambda i: (0, 0)),
            pl.BlockSpec((1, IN_DIM), lambda i: (0, 0)),
        ],
        out_specs=pl.BlockSpec((tm, IN_DIM), lambda i: (i, 0)),
        compiler_params=pltpu.CompilerParams(
            dimension_semantics=("parallel",),
            vmem_limit_bytes=_VMEM_LIMIT),
        cost_estimate=pl.CostEstimate(flops=flops,
                                      transcendentals=n_pad * IN_DIM,
                                      bytes_accessed=bytes_accessed),
    )(b_full, w3, b3, w4, b4)


def _hash_call(h_rows, hT, true_n):
    n_pad = h_rows.shape[0]
    ti, chunk = HASH_TI, HASH_CHUNK
    grid = (n_pad // ti, n_pad // chunk)
    flops = 4 * n_pad * n_pad * ENCODE_LENGTH
    bytes_accessed = 4 * ENCODE_LENGTH * (n_pad * (2 + n_pad // ti))
    return pl.pallas_call(
        _make_hash_kernel(true_n, ti, chunk),
        out_shape=jax.ShapeDtypeStruct((n_pad, ENCODE_LENGTH), jnp.float32),
        grid=grid,
        in_specs=[
            pl.BlockSpec((ti, ENCODE_LENGTH), lambda i, j: (i, 0)),   # h rows (i side)
            pl.BlockSpec((ENCODE_LENGTH, chunk), lambda i, j: (0, j)),  # h^T (j side)
        ],
        out_specs=pl.BlockSpec((ti, ENCODE_LENGTH), lambda i, j: (i, 0)),
        scratch_shapes=[pltpu.VMEM((ti, ENCODE_LENGTH), jnp.int32)],
        compiler_params=pltpu.CompilerParams(
            dimension_semantics=("parallel", "arbitrary"),
            vmem_limit_bytes=_VMEM_LIMIT),
        cost_estimate=pl.CostEstimate(flops=flops, transcendentals=0,
                                      bytes_accessed=bytes_accessed),
    )(h_rows, hT)


def _fused_call(x, params):
    n = x.shape[0]
    vm = pl.BlockSpec(memory_space=pltpu.MemorySpace.VMEM)
    return pl.pallas_call(
        fused_kernel,
        out_shape=(jax.ShapeDtypeStruct((n, IN_DIM), jnp.float32),
                   jax.ShapeDtypeStruct((n, ENCODE_LENGTH), jnp.float32),
                   jax.ShapeDtypeStruct((n, ENCODE_LENGTH), jnp.float32)),
        in_specs=[vm] * 9,
        out_specs=(vm, vm, vm),
        compiler_params=pltpu.CompilerParams(vmem_limit_bytes=_VMEM_LIMIT),
    )(x, *params)


# ==========================================================================
# Parameters
# ==========================================================================
def init_params(key):
    """Deterministic synthetic init (PyTorch-Linear-style uniform scaling).
    Weights stored in bf16 (MXU operands), biases in f32, layout (in, out)."""
    def linear(k, fan_in, fan_out):
        kw, kb = jax.random.split(k)
        bound = 1.0 / float(fan_in) ** 0.5
        w = jax.random.uniform(kw, (fan_in, fan_out), jnp.float32,
                               -bound, bound).astype(jnp.bfloat16)
        b = jax.random.uniform(kb, (1, fan_out), jnp.float32, -bound, bound)
        return w, b

    k1, k2, k3, k4 = jax.random.split(key, 4)
    w1, b1 = linear(k1, IN_DIM, HID)               # Linear(784, 256)
    w2, b2 = linear(k2, HID, ENCODE_LENGTH)        # Linear(256, 16)
    w3, b3 = linear(k3, ENCODE_LENGTH, HID)        # Linear(16, 256)
    w4, b4 = linear(k4, HID, IN_DIM)               # Linear(256, 784)
    return (w1, b1, w2, b2, w3, b3, w4, b4)


# ==========================================================================
# Forward
# ==========================================================================
@jax.jit
def autoencoder_forward(x, params):
    w1, b1, w2, b2, w3, b3, w4, b4 = params
    n = x.shape[0]

    # ---- fused small-batch path: one kernel, zero wrapper plumbing ----
    if n <= FUSED_MAX_N:
        return _fused_call(x, params)

    # ---- chained large-batch path ----
    if n >= 4096:
        tm = 1024
    elif n >= 1024:
        tm = 512
    else:
        tm = 256
    n_pad = _round_up(n, tm)
    x_p = x if n_pad == n else jnp.pad(x, ((0, n_pad - n), (0, 0)))

    h_rows = _encoder_call(x_p, w1, b1, w2, b2, tm)        # (n_pad, 16)
    hT = jnp.transpose(h_rows)                             # (16, n_pad), tiny
    b_full = _hash_call(h_rows, hT, n)                     # (n_pad, 16)
    xr_pad = _decoder_call(b_full, w3, b3, w4, b4, tm)     # (n_pad, 784)

    return xr_pad[:n], h_rows[:n], b_full[:n]


# ==========================================================================
if __name__ == "__main__":
    key = jax.random.PRNGKey(0)
    kx1, kx2, kp = jax.random.split(key, 3)
    params = init_params(kp)

    def run_and_check(x):
        n = x.shape[0]
        x_recon, h, b = autoencoder_forward(x, params)
        jax.block_until_ready((x_recon, h, b))

        assert x_recon.shape == (n, IN_DIM)
        assert h.shape == (n, ENCODE_LENGTH)
        assert b.shape == (n, ENCODE_LENGTH)

        # pure-JAX reference mirroring the kernel math (bf16 MXU, f32 accum)
        w1, b1, w2, b2, w3, b3, w4, b4 = params
        f32 = jnp.float32
        z1 = jnp.maximum(jnp.dot(x.astype(jnp.bfloat16), w1,
                                 preferred_element_type=f32) + b1, 0.0)
        h_ref = jnp.dot(z1.astype(jnp.bfloat16), w2,
                        preferred_element_type=f32) + b2

        # b reference: stable descending sort per column (from the kernel's h)
        order = jnp.argsort(-h, axis=0)
        b_creat = jnp.concatenate(
            [jnp.ones((n // 2, ENCODE_LENGTH), f32),
             -jnp.ones((n - n // 2, ENCODE_LENGTH), f32)], axis=0)
        b_ref = jnp.zeros((n, ENCODE_LENGTH), f32).at[
            order, jnp.arange(ENCODE_LENGTH)[None, :]].set(b_creat)

        z2 = jnp.maximum(jnp.dot(b_ref.astype(jnp.bfloat16), w3,
                                 preferred_element_type=f32) + b3, 0.0)
        xr_ref = jax.nn.sigmoid(jnp.dot(z2.astype(jnp.bfloat16), w4,
                                        preferred_element_type=f32) + b4)

        # each column of b holds exactly n//2 (+1)s
        assert bool(jnp.all(jnp.sum(b, axis=0) == float(2 * (n // 2) - n)))
        assert bool(jnp.all((x_recon >= 0.0) & (x_recon <= 1.0)))
        assert bool(jnp.allclose(h, h_ref, atol=1e-3, rtol=1e-3))
        assert bool(jnp.all(b == b_ref))
        assert bool(jnp.allclose(x_recon, xr_ref, atol=1e-3, rtol=1e-3))

    # small batch -> fused single-kernel path
    x_small = jax.random.uniform(kx1, (8, IN_DIM), jnp.float32)
    run_and_check(x_small)

    # larger batch -> chained (encoder / gridded hash / decoder) path
    x_big = jax.random.uniform(kx2, (640, IN_DIM), jnp.float32)
    run_and_check(x_big)

    print("KERNEL_OK")
</pallas_src>

<mosaic_0001>
module attributes {stable_mosaic.version = 11 : i64} {
  func.func @fused_kernel(%arg0: memref<8x784xf32, #tpu.memory_space<vmem>>, %arg1: memref<784x256xbf16, #tpu.memory_space<vmem>>, %arg2: memref<1x256xf32, #tpu.memory_space<vmem>>, %arg3: memref<256x16xbf16, #tpu.memory_space<vmem>>, %arg4: memref<1x16xf32, #tpu.memory_space<vmem>>, %arg5: memref<16x256xbf16, #tpu.memory_space<vmem>>, %arg6: memref<1x256xf32, #tpu.memory_space<vmem>>, %arg7: memref<256x784xbf16, #tpu.memory_space<vmem>>, %arg8: memref<1x784xf32, #tpu.memory_space<vmem>>, %arg9: memref<8x784xf32, #tpu.memory_space<vmem>>, %arg10: memref<8x16xf32, #tpu.memory_space<vmem>>, %arg11: memref<8x16xf32, #tpu.memory_space<vmem>>) attributes {dimension_semantics = [], scalar_prefetch = 0 : i64, scratch_operands = 0 : i64, tpu.core_type = #tpu.core_type<tc>} {
    %c0 = arith.constant 0 : index
    %c0_0 = arith.constant 0 : index
    %0 = vector.load %arg0[%c0, %c0_0] : memref<8x784xf32, #tpu.memory_space<vmem>>, vector<8x784xf32>
    %1 = arith.truncf %0 : vector<8x784xf32> to vector<8x784xbf16>
    %c0_1 = arith.constant 0 : index
    %c0_2 = arith.constant 0 : index
    %2 = vector.load %arg1[%c0_1, %c0_2] : memref<784x256xbf16, #tpu.memory_space<vmem>>, vector<784x256xbf16>
    %cst = arith.constant dense<0.000000e+00> : vector<8x256xf32>
    %3 = tpu.matmul %1, %2, %cst {dimension_numbers = #tpu.dot_dimension_numbers<[1], [0], [0], [1], [0, 0, 1, 1], [], []>} : vector<8x784xbf16>, vector<784x256xbf16>, vector<8x256xf32> -> vector<8x256xf32>
    %c0_3 = arith.constant 0 : index
    %c0_4 = arith.constant 0 : index
    %4 = vector.load %arg2[%c0_3, %c0_4] : memref<1x256xf32, #tpu.memory_space<vmem>>, vector<1x256xf32>
    %5 = vector.broadcast %4 : vector<1x256xf32> to vector<8x256xf32>
    %6 = arith.addf %3, %5 : vector<8x256xf32>
    %cst_5 = arith.constant 0.000000e+00 : f32
    %7 = vector.broadcast %cst_5 : f32 to vector<8x256xf32>
    %8 = arith.maximumf %6, %7 : vector<8x256xf32>
    %9 = arith.truncf %8 : vector<8x256xf32> to vector<8x256xbf16>
    %c0_6 = arith.constant 0 : index
    %c0_7 = arith.constant 0 : index
    %10 = vector.load %arg3[%c0_6, %c0_7] : memref<256x16xbf16, #tpu.memory_space<vmem>>, vector<256x16xbf16>
    %cst_8 = arith.constant dense<0.000000e+00> : vector<8x16xf32>
    %11 = tpu.matmul %9, %10, %cst_8 {dimension_numbers = #tpu.dot_dimension_numbers<[1], [0], [0], [1], [0, 0, 1, 1], [], []>} : vector<8x256xbf16>, vector<256x16xbf16>, vector<8x16xf32> -> vector<8x16xf32>
    %c0_9 = arith.constant 0 : index
    %c0_10 = arith.constant 0 : index
    %12 = vector.load %arg4[%c0_9, %c0_10] : memref<1x16xf32, #tpu.memory_space<vmem>>, vector<1x16xf32>
    %13 = vector.broadcast %12 : vector<1x16xf32> to vector<8x16xf32>
    %14 = arith.addf %11, %13 : vector<8x16xf32>
    %c0_11 = arith.constant 0 : index
    %c0_12 = arith.constant 0 : index
    %15 = vector.load %arg10[%c0_11, %c0_12] : memref<8x16xf32, #tpu.memory_space<vmem>>, vector<8x16xf32>
    tpu.vector_store %arg10[%c0_11, %c0_12], %14 {strides = array<i32>} : memref<8x16xf32, #tpu.memory_space<vmem>>, vector<8x16xf32>,
    %16 = tpu.iota {dimensions = array<i32: 0>} : vector<8x1x1xi32>
    %17 = tpu.iota {dimensions = array<i32: 1>} : vector<1x8x1xi32>
    %18 = vector.shape_cast %14 : vector<8x16xf32> to vector<1x8x16xf32>
    %19 = vector.shape_cast %14 : vector<8x16xf32> to vector<8x1x16xf32>
    %20 = vector.broadcast %18 : vector<1x8x16xf32> to vector<8x8x16xf32>
    %21 = vector.broadcast %19 : vector<8x1x16xf32> to vector<8x8x16xf32>
    %22 = arith.cmpf ogt, %20, %21 : vector<8x8x16xf32>
    %23 = vector.broadcast %18 : vector<1x8x16xf32> to vector<8x8x16xf32>
    %24 = vector.broadcast %19 : vector<8x1x16xf32> to vector<8x8x16xf32>
    %25 = arith.cmpf oeq, %23, %24 : vector<8x8x16xf32>
    %26 = vector.broadcast %17 : vector<1x8x1xi32> to vector<8x8x1xi32>
    %27 = vector.broadcast %16 : vector<8x1x1xi32> to vector<8x8x1xi32>
    %28 = arith.cmpi slt, %26, %27 : vector<8x8x1xi32>
    %29 = vector.broadcast %28 : vector<8x8x1xi1> to vector<8x8x16xi1>
    %30 = arith.andi %25, %29 : vector<8x8x16xi1>
    %31 = arith.ori %22, %30 : vector<8x8x16xi1>
    %32 = arith.extui %31 : vector<8x8x16xi1> to vector<8x8x16xi32>
    %cst_13 = arith.constant dense<0> : vector<8x16xi32>
    %33 = vector.multi_reduction <add>, %32, %cst_13 [1] : vector<8x8x16xi32> to vector<8x16xi32>
    %c4_i32 = arith.constant 4 : i32
    %34 = vector.broadcast %c4_i32 : i32 to vector<8x16xi32>
    %35 = arith.cmpi slt, %33, %34 : vector<8x16xi32>
    %cst_14 = arith.constant 1.000000e+00 : f32
    %cst_15 = arith.constant -1.000000e+00 : f32
    %36 = vector.broadcast %cst_14 : f32 to vector<8x16xf32>
    %37 = vector.broadcast %cst_15 : f32 to vector<8x16xf32>
    %38 = arith.select %35, %36, %37 : vector<8x16xi1>, vector<8x16xf32>
    %c0_16 = arith.constant 0 : index
    %c0_17 = arith.constant 0 : index
    %39 = vector.load %arg11[%c0_16, %c0_17] : memref<8x16xf32, #tpu.memory_space<vmem>>, vector<8x16xf32>
    tpu.vector_store %arg11[%c0_16, %c0_17], %38 {strides = array<i32>} : memref<8x16xf32, #tpu.memory_space<vmem>>, vector<8x16xf32>,
    %40 = arith.truncf %38 : vector<8x16xf32> to vector<8x16xbf16>
    %c0_18 = arith.constant 0 : index
    %c0_19 = arith.constant 0 : index
    %41 = vector.load %arg5[%c0_18, %c0_19] : memref<16x256xbf16, #tpu.memory_space<vmem>>, vector<16x256xbf16>
    %cst_20 = arith.constant dense<0.000000e+00> : vector<8x256xf32>
    %42 = tpu.matmul %40, %41, %cst_20 {dimension_numbers = #tpu.dot_dimension_numbers<[1], [0], [0], [1], [0, 0, 1, 1], [], []>} : vector<8x16xbf16>, vector<16x256xbf16>, vector<8x256xf32> -> vector<8x256xf32>
    %c0_21 = arith.constant 0 : index
    %c0_22 = arith.constant 0 : index
    %43 = vector.load %arg6[%c0_21, %c0_22] : memref<1x256xf32, #tpu.memory_space<vmem>>, vector<1x256xf32>
    %44 = vector.broadcast %43 : vector<1x256xf32> to vector<8x256xf32>
    %45 = arith.addf %42, %44 : vector<8x256xf32>
    %cst_23 = arith.constant 0.000000e+00 : f32
    %46 = vector.broadcast %cst_23 : f32 to vector<8x256xf32>
    %47 = arith.maximumf %45, %46 : vector<8x256xf32>
    %48 = arith.truncf %47 : vector<8x256xf32> to vector<8x256xbf16>
    %c0_24 = arith.constant 0 : index
    %c0_25 = arith.constant 0 : index
    %49 = vector.load %arg7[%c0_24, %c0_25] : memref<256x784xbf16, #tpu.memory_space<vmem>>, vector<256x784xbf16>
    %cst_26 = arith.constant dense<0.000000e+00> : vector<8x784xf32>
    %50 = tpu.matmul %48, %49, %cst_26 {dimension_numbers = #tpu.dot_dimension_numbers<[1], [0], [0], [1], [0, 0, 1, 1], [], []>} : vector<8x256xbf16>, vector<256x784xbf16>, vector<8x784xf32> -> vector<8x784xf32>
    %c0_27 = arith.constant 0 : index
    %c0_28 = arith.constant 0 : index
    %51 = vector.load %arg8[%c0_27, %c0_28] : memref<1x784xf32, #tpu.memory_space<vmem>>, vector<1x784xf32>
    %52 = vector.broadcast %51 : vector<1x784xf32> to vector<8x784xf32>
    %53 = arith.addf %50, %52 : vector<8x784xf32>
    %cst_29 = arith.constant 5.000000e-01 : f32
    %54 = vector.broadcast %cst_29 : f32 to vector<8x784xf32>
    %55 = arith.mulf %54, %53 : vector<8x784xf32>
    %56 = math.tanh %55 : vector<8x784xf32>
    %cst_30 = arith.constant 1.000000e+00 : f32
    %57 = vector.broadcast %cst_30 : f32 to vector<8x784xf32>
    %58 = arith.addf %56, %57 : vector<8x784xf32>
    %cst_31 = arith.constant 5.000000e-01 : f32
    %59 = vector.broadcast %cst_31 : f32 to vector<8x784xf32>
    %60 = arith.mulf %59, %58 : vector<8x784xf32>
    %c0_32 = arith.constant 0 : index
    %c0_33 = arith.constant 0 : index
    %61 = vector.load %arg9[%c0_32, %c0_33] : memref<8x784xf32, #tpu.memory_space<vmem>>, vector<8x784xf32>
    tpu.vector_store %arg9[%c0_32, %c0_33], %60 {strides = array<i32>} : memref<8x784xf32, #tpu.memory_space<vmem>>, vector<8x784xf32>,
    return
  }
}

</mosaic_0001>

<llo_original>
// kernel: autoencoder_forward.1
$region0: #{autoencoder_forward.1}
  #allocation0 [shape = 'u32[]', space=smem, size = 0x4, offset = 0x4, fixed_abs, tag = 'smem constant byte address 0x4 - core index']
  #allocation1 [shape = 'u32[144,128]{1,0:T(1,128)}', space=vmem, size = 0x12000, scoped, tag = 'internal scratch']
  %s0 = inlined_call_operand.vmem [shape: f32[8,784], index: 0, kind: input, shape index: {}]
  %s1 = inlined_call_operand.vmem [shape: bf16[784,256], index: 1, kind: input, shape index: {}]
  %s2 = inlined_call_operand.vmem [shape: f32[1,256], index: 2, kind: input, shape index: {}]
  %s3 = inlined_call_operand.vmem [shape: bf16[256,16], index: 3, kind: input, shape index: {}]
  %s4 = inlined_call_operand.vmem [shape: f32[1,16], index: 4, kind: input, shape index: {}]
  %s5 = inlined_call_operand.vmem [shape: bf16[16,256], index: 5, kind: input, shape index: {}]
  %s6 = inlined_call_operand.vmem [shape: f32[1,256], index: 6, kind: input, shape index: {}]
  %s7 = inlined_call_operand.vmem [shape: bf16[256,784], index: 7, kind: input, shape index: {}]
  %s8 = inlined_call_operand.vmem [shape: f32[1,784], index: 8, kind: input, shape index: {}]
  %s9 = inlined_call_operand.hbm [shape: f32[8,784], index: 9, kind: output, shape index: {0}]
  %s10 = inlined_call_operand.hbm [shape: f32[8,16], index: 10, kind: output, shape index: {1}]
  %s11 = inlined_call_operand.hbm [shape: f32[8,16], index: 11, kind: output, shape index: {2}]
  %12 = xla_tuple %s9, %s10, %s11
  %s13 = sld [smem:[#allocation0]]
  $region62: #{autoencoder_forward.1} parent=0
    _
  %s15 = ssub.s32 1, %s13
  %s16 = scalar_select 0, %s15, %s13
  $region1: #{autoencoder_forward.1} parent=0
    #allocation2 [shape = 'u8[28672]{0}', space=vmem, size = 0x7000, scoped, tag = 'output window, operand 0, single buffered']
    #allocation3 [shape = 's32[1]{0}', space=sflag, size = 0x4, scoped, tag = 'scoped memory for autoencoder_forward.1']
    #allocation4 [shape = 'u8[4096]{0}', space=vmem, size = 0x1000, scoped, tag = 'output window, operand 1, single buffered']
    #allocation5 [shape = 's32[1]{0}', space=sflag, size = 0x4, scoped, tag = 'scoped memory for autoencoder_forward.1']
    #allocation6 [shape = 'u8[4096]{0}', space=vmem, size = 0x1000, scoped, tag = 'output window, operand 2, single buffered']
    %17 = vsyncpa [#allocation3], 0
    %18 = vsyncpa [#allocation5], 0
    // Predicated region
    $region2: #{autoencoder_forward.1} parent=1 // pred_check
      _
    $region3: #{autoencoder_forward.1} parent=1 // pred_check_branch
      %20 = sbr.rel (0) target = $region5
    $region4: #{autoencoder_forward.1} parent=1 // pred_region
      _
    $region5: #{autoencoder_forward.1} parent=1 // pred_fallthru
      _
    // Predicated region
    $region6: #{autoencoder_forward.1} parent=1 // pred_check
      _
    $region7: #{autoencoder_forward.1} parent=1 // pred_check_branch
      %22 = sbr.rel (0) target = $region9
    $region8: #{autoencoder_forward.1} parent=1 // pred_region
      _
    $region9: #{autoencoder_forward.1} parent=1 // pred_fallthru
      _
    // Predicated region
    $region10: #{autoencoder_forward.1} parent=1 // pred_check
      _
    $region11: #{autoencoder_forward.1} parent=1 // pred_check_branch
      %24 = sbr.rel (0) target = $region13
    $region12: #{autoencoder_forward.1} parent=1 // pred_region
      _
    $region13: #{autoencoder_forward.1} parent=1 // pred_fallthru
      _
    // Predicated region
    $region14: #{autoencoder_forward.1} parent=1 // pred_check
      _
    $region15: #{autoencoder_forward.1} parent=1 // pred_check_branch
      %26 = sbr.rel (0) target = $region17
    $region16: #{autoencoder_forward.1} parent=1 // pred_region
      _
    $region17: #{autoencoder_forward.1} parent=1 // pred_fallthru
      _
    // Predicated region
    $region18: #{autoencoder_forward.1} parent=1 // pred_check
      _
    $region19: #{autoencoder_forward.1} parent=1 // pred_check_branch
      %28 = sbr.rel (0) target = $region21
    $region20: #{autoencoder_forward.1} parent=1 // pred_region
      _
    $region21: #{autoencoder_forward.1} parent=1 // pred_fallthru
      _
    // Predicated region
    $region22: #{autoencoder_forward.1} parent=1 // pred_check
      _
    $region23: #{autoencoder_forward.1} parent=1 // pred_check_branch
      %30 = sbr.rel (0) target = $region25
    $region24: #{autoencoder_forward.1} parent=1 // pred_region
      _
    $region25: #{autoencoder_forward.1} parent=1 // pred_fallthru
      _
    // Predicated region
    $region26: #{autoencoder_forward.1} parent=1 // pred_check
      _
    $region27: #{autoencoder_forward.1} parent=1 // pred_check_branch
      %32 = sbr.rel (0) target = $region29
    $region28: #{autoencoder_forward.1} parent=1 // pred_region
      _
    $region29: #{autoencoder_forward.1} parent=1 // pred_fallthru
      _
    // Predicated region
    $region30: #{autoencoder_forward.1} parent=1 // pred_check
      _
    $region31: #{autoencoder_forward.1} parent=1 // pred_check_branch
      %34 = sbr.rel (0) target = $region33
    $region32: #{autoencoder_forward.1} parent=1 // pred_region
      _
    $region33: #{autoencoder_forward.1} parent=1 // pred_fallthru
      _
    // Predicated region
    $region34: #{autoencoder_forward.1} parent=1 // pred_check
      _
    $region35: #{autoencoder_forward.1} parent=1 // pred_check_branch
      %36 = sbr.rel (0) target = $region37
    $region36: #{autoencoder_forward.1} parent=1 // pred_region
      _
    $region37: #{autoencoder_forward.1} parent=1 // pred_fallthru
      _
    %v38 = vld [vmem:[%s0] sm:$0xff]
    %v39 = vld [vmem:[%s0 + $0x8] sm:$0xff]
    %v40 = vld [vmem:[%s0 + $0x10] sm:$0xff]
    %v41 = vld [vmem:[%s0 + $0x18] sm:$0xff]
    %v42 = vld [vmem:[%s0 + $0x20] sm:$0xff]
    %v43 = vld [vmem:[%s0 + $0x28] sm:$0xff]
    %v44 = vld [vmem:[%s0 + $0x30] sm:$0xff]
    %v45 = vpack.c.bf16 %v38, %v38
    %v46 = vpack.c.bf16 %v39, %v39
    %v47 = vpack.c.bf16 %v40, %v40
    %v48 = vpack.c.bf16 %v41, %v41
    %v49 = vpack.c.bf16 %v42, %v42
    %v50 = vpack.c.bf16 %v43, %v43
    %v51 = vpack.c.bf16 %v44, %v44
    %v52 = vld [vmem:[%s1] sm:$0xff]
    %v53 = vld [vmem:[%s1 + $0x8] sm:$0xff]
    %v54 = vld [vmem:[%s1 + $0x10] sm:$0xff]
    %v55 = vld [vmem:[%s1 + $0x18] sm:$0xff]
    %v56 = vld [vmem:[%s1 + $0x20] sm:$0xff]
    %v57 = vld [vmem:[%s1 + $0x28] sm:$0xff]
    %v58 = vld [vmem:[%s1 + $0x30] sm:$0xff]
    %v59 = vld [vmem:[%s1 + $0x38] sm:$0xff]
    %v60 = vld [vmem:[%s1 + $0x40] sm:$0xff]
    %v61 = vld [vmem:[%s1 + $0x48] sm:$0xff]
    %v62 = vld [vmem:[%s1 + $0x50] sm:$0xff]
    %v63 = vld [vmem:[%s1 + $0x58] sm:$0xff]
    %v64 = vld [vmem:[%s1 + $0x60] sm:$0xff]
    %v65 = vld [vmem:[%s1 + $0x68] sm:$0xff]
    %v66 = vld [vmem:[%s1 + $0x70] sm:$0xff]
    %v67 = vld [vmem:[%s1 + $0x78] sm:$0xff]
    %v68 = vld [vmem:[%s1 + $0x80] sm:$0xff]
    %v69 = vld [vmem:[%s1 + $0x88] sm:$0xff]
    %v70 = vld [vmem:[%s1 + $0x90] sm:$0xff]
    %v71 = vld [vmem:[%s1 + $0x98] sm:$0xff]
    %v72 = vld [vmem:[%s1 + $0xa0] sm:$0xff]
    %v73 = vld [vmem:[%s1 + $0xa8] sm:$0xff]
    %v74 = vld [vmem:[%s1 + $0xb0] sm:$0xff]
    %v75 = vld [vmem:[%s1 + $0xb8] sm:$0xff]
    %v76 = vld [vmem:[%s1 + $0xc0] sm:$0xff]
    %v77 = vld [vmem:[%s1 + $0xc8] sm:$0xff]
    %v78 = vld [vmem:[%s1 + $0xd0] sm:$0xff]
    %v79 = vld [vmem:[%s1 + $0xd8] sm:$0xff]
    %v80 = vld [vmem:[%s1 + $0xe0] sm:$0xff]
    %v81 = vld [vmem:[%s1 + $0xe8] sm:$0xff]
    %v82 = vld [vmem:[%s1 + $0xf0] sm:$0xff]
    %v83 = vld [vmem:[%s1 + $0xf8] sm:$0xff]
    %v84 = vld [vmem:[%s1 + $0x100] sm:$0xff]
    %v85 = vld [vmem:[%s1 + $0x108] sm:$0xff]
    %v86 = vld [vmem:[%s1 + $0x110] sm:$0xff]
    %v87 = vld [vmem:[%s1 + $0x118] sm:$0xff]
    %v88 = vld [vmem:[%s1 + $0x120] sm:$0xff]
    %v89 = vld [vmem:[%s1 + $0x128] sm:$0xff]
    %v90 = vld [vmem:[%s1 + $0x130] sm:$0xff]
    %v91 = vld [vmem:[%s1 + $0x138] sm:$0xff]
    %v92 = vld [vmem:[%s1 + $0x140] sm:$0xff]
    %v93 = vld [vmem:[%s1 + $0x148] sm:$0xff]
    %v94 = vld [vmem:[%s1 + $0x150] sm:$0xff]
    %v95 = vld [vmem:[%s1 + $0x158] sm:$0xff]
    %v96 = vld [vmem:[%s1 + $0x160] sm:$0xff]
    %v97 = vld [vmem:[%s1 + $0x168] sm:$0xff]
    %v98 = vld [vmem:[%s1 + $0x170] sm:$0xff]
    %v99 = vld [vmem:[%s1 + $0x178] sm:$0xff]
    %v100 = vld [vmem:[%s1 + $0x180] sm:$0xff]
    %v101 = vld [vmem:[%s1 + $0x188] sm:$0xff]
    %v102 = vld [vmem:[%s1 + $0x190] sm:$0xff]
    %v103 = vld [vmem:[%s1 + $0x198] sm:$0xff]
    %v104 = vld [vmem:[%s1 + $0x1a0] sm:$0xff]
    %v105 = vld [vmem:[%s1 + $0x1a8] sm:$0xff]
    %v106 = vld [vmem:[%s1 + $0x1b0] sm:$0xff]
    %v107 = vld [vmem:[%s1 + $0x1b8] sm:$0xff]
    %v108 = vld [vmem:[%s1 + $0x1c0] sm:$0xff]
    %v109 = vld [vmem:[%s1 + $0x1c8] sm:$0xff]
    %v110 = vld [vmem:[%s1 + $0x1d0] sm:$0xff]
    %v111 = vld [vmem:[%s1 + $0x1d8] sm:$0xff]
    %v112 = vld [vmem:[%s1 + $0x1e0] sm:$0xff]
    %v113 = vld [vmem:[%s1 + $0x1e8] sm:$0xff]
    %v114 = vld [vmem:[%s1 + $0x1f0] sm:$0xff]
    %v115 = vld [vmem:[%s1 + $0x1f8] sm:$0xff]
    %v116 = vld [vmem:[%s1 + $0x200] sm:$0xff]
    %v117 = vld [vmem:[%s1 + $0x208] sm:$0xff]
    %v118 = vld [vmem:[%s1 + $0x210] sm:$0xff]
    %v119 = vld [vmem:[%s1 + $0x218] sm:$0xff]
    %v120 = vld [vmem:[%s1 + $0x220] sm:$0xff]
    %v121 = vld [vmem:[%s1 + $0x228] sm:$0xff]
    %v122 = vld [vmem:[%s1 + $0x230] sm:$0xff]
    %v123 = vld [vmem:[%s1 + $0x238] sm:$0xff]
    %v124 = vld [vmem:[%s1 + $0x240] sm:$0xff]
    %v125 = vld [vmem:[%s1 + $0x248] sm:$0xff]
    %v126 = vld [vmem:[%s1 + $0x250] sm:$0xff]
    %v127 = vld [vmem:[%s1 + $0x258] sm:$0xff]
    %v128 = vld [vmem:[%s1 + $0x260] sm:$0xff]
    %v129 = vld [vmem:[%s1 + $0x268] sm:$0xff]
    %v130 = vld [vmem:[%s1 + $0x270] sm:$0xff]
    %v131 = vld [vmem:[%s1 + $0x278] sm:$0xff]
    %v132 = vld [vmem:[%s1 + $0x280] sm:$0xff]
    %v133 = vld [vmem:[%s1 + $0x288] sm:$0xff]
    %v134 = vld [vmem:[%s1 + $0x290] sm:$0xff]
    %v135 = vld [vmem:[%s1 + $0x298] sm:$0xff]
    %v136 = vld [vmem:[%s1 + $0x2a0] sm:$0xff]
    %v137 = vld [vmem:[%s1 + $0x2a8] sm:$0xff]
    %v138 = vld [vmem:[%s1 + $0x2b0] sm:$0xff]
    %v139 = vld [vmem:[%s1 + $0x2b8] sm:$0xff]
    %v140 = vld [vmem:[%s1 + $0x2c0] sm:$0xff]
    %v141 = vld [vmem:[%s1 + $0x2c8] sm:$0xff]
    %v142 = vld [vmem:[%s1 + $0x2d0] sm:$0xff]
    %v143 = vld [vmem:[%s1 + $0x2d8] sm:$0xff]
    %v144 = vld [vmem:[%s1 + $0x2e0] sm:$0xff]
    %v145 = vld [vmem:[%s1 + $0x2e8] sm:$0xff]
    %v146 = vld [vmem:[%s1 + $0x2f0] sm:$0xff]
    %v147 = vld [vmem:[%s1 + $0x2f8] sm:$0xff]
    %v148 = vld [vmem:[%s1 + $0x300] sm:$0xff]
    %v149 = vld [vmem:[%s1 + $0x308] sm:$0xff]
    %v150 = vld [vmem:[%s2] sm:$0x3]
    %v152 = vlaneseq
    %v153 = vshrl.u32 %v152, 7
    %v154 = vsub.s32 0, %v153
    %v155 = vrot.slane %v150, %v154
    %v156 = vlaneseq
    %v157 = vshrl.u32 %v156, 7
    %v158 = vsub.s32 1, %v157
    %v159 = vrot.slane %v150, %v158
    %v260 = vunpack.c.l.b16 %v52
    %v261 = vunpack.c.h.b16 %v52
    %v262 = vunpack.c.l.b16 %v53
    %v263 = vunpack.c.h.b16 %v53
    %v264 = vunpack.c.l.b16 %v54
    %v265 = vunpack.c.h.b16 %v54
    %v266 = vunpack.c.l.b16 %v55
    %v267 = vunpack.c.h.b16 %v55
    %v268 = vunpack.c.l.b16 %v56
    %v269 = vunpack.c.h.b16 %v56
    %v270 = vunpack.c.l.b16 %v57
    %v271 = vunpack.c.h.b16 %v57
    %v272 = vunpack.c.l.b16 %v58
    %v273 = vunpack.c.h.b16 %v58
    %v274 = vunpack.c.l.b16 %v59
    %v275 = vunpack.c.h.b16 %v59
    %v276 = vunpack.c.l.b16 %v60
    %v277 = vunpack.c.h.b16 %v60
    %v278 = vunpack.c.l.b16 %v61
    %v279 = vunpack.c.h.b16 %v61
    %v280 = vunpack.c.l.b16 %v62
    %v281 = vunpack.c.h.b16 %v62
    %v282 = vunpack.c.l.b16 %v63
    %v283 = vunpack.c.h.b16 %v63
    %v284 = vunpack.c.l.b16 %v64
    %v285 = vunpack.c.h.b16 %v64
    %v286 = vunpack.c.l.b16 %v65
    %v287 = vunpack.c.h.b16 %v65
    %v288 = vunpack.c.l.b16 %v66
    %v289 = vunpack.c.h.b16 %v66
    %v290 = vunpack.c.l.b16 %v67
    %v291 = vunpack.c.h.b16 %v67
    %v292 = vunpack.c.l.b16 %v68
    %v293 = vunpack.c.h.b16 %v68
    %v294 = vunpack.c.l.b16 %v69
    %v295 = vunpack.c.h.b16 %v69
    %v296 = vunpack.c.l.b16 %v70
    %v297 = vunpack.c.h.b16 %v70
    %v298 = vunpack.c.l.b16 %v71
    %v299 = vunpack.c.h.b16 %v71
    %v300 = vunpack.c.l.b16 %v72
    %v301 = vunpack.c.h.b16 %v72
    %v302 = vunpack.c.l.b16 %v73
    %v303 = vunpack.c.h.b16 %v73
    %v304 = vunpack.c.l.b16 %v74
    %v305 = vunpack.c.h.b16 %v74
    %v306 = vunpack.c.l.b16 %v75
    %v307 = vunpack.c.h.b16 %v75
    %v308 = vunpack.c.l.b16 %v76
    %v309 = vunpack.c.h.b16 %v76
    %v310 = vunpack.c.l.b16 %v77
    %v311 = vunpack.c.h.b16 %v77
    %v312 = vunpack.c.l.b16 %v78
    %v313 = vunpack.c.h.b16 %v78
    %v314 = vunpack.c.l.b16 %v79
    %v315 = vunpack.c.h.b16 %v79
    %v316 = vunpack.c.l.b16 %v80
    %v317 = vunpack.c.h.b16 %v80
    %v318 = vunpack.c.l.b16 %v81
    %v319 = vunpack.c.h.b16 %v81
    %v320 = vunpack.c.l.b16 %v82
    %v321 = vunpack.c.h.b16 %v82
    %v322 = vunpack.c.l.b16 %v83
    %v323 = vunpack.c.h.b16 %v83
    %v324 = vunpack.c.l.b16 %v84
    %v325 = vunpack.c.h.b16 %v84
    %v326 = vunpack.c.l.b16 %v85
    %v327 = vunpack.c.h.b16 %v85
    %v328 = vunpack.c.l.b16 %v86
    %v329 = vunpack.c.h.b16 %v86
    %v330 = vunpack.c.l.b16 %v87
    %v331 = vunpack.c.h.b16 %v87
    %v332 = vunpack.c.l.b16 %v88
    %v333 = vunpack.c.h.b16 %v88
    %v334 = vunpack.c.l.b16 %v89
    %v335 = vunpack.c.h.b16 %v89
    %v336 = vunpack.c.l.b16 %v90
    %v337 = vunpack.c.h.b16 %v90
    %v338 = vunpack.c.l.b16 %v91
    %v339 = vunpack.c.h.b16 %v91
    %v340 = vunpack.c.l.b16 %v92
    %v341 = vunpack.c.h.b16 %v92
    %v342 = vunpack.c.l.b16 %v93
    %v343 = vunpack.c.h.b16 %v93
    %v344 = vunpack.c.l.b16 %v94
    %v345 = vunpack.c.h.b16 %v94
    %v346 = vunpack.c.l.b16 %v95
    %v347 = vunpack.c.h.b16 %v95
    %v348 = vunpack.c.l.b16 %v96
    %v349 = vunpack.c.h.b16 %v96
    %v350 = vunpack.c.l.b16 %v97
    %v351 = vunpack.c.h.b16 %v97
    %v352 = vunpack.c.l.b16 %v98
    %v353 = vunpack.c.h.b16 %v98
    %v354 = vunpack.c.l.b16 %v99
    %v355 = vunpack.c.h.b16 %v99
    %v356 = vunpack.c.l.b16 %v100
    %v357 = vunpack.c.h.b16 %v100
    %v358 = vunpack.c.l.b16 %v101
    %v359 = vunpack.c.h.b16 %v101
    %v360 = vunpack.c.l.b16 %v102
    %v361 = vunpack.c.h.b16 %v102
    %v362 = vunpack.c.l.b16 %v103
    %v363 = vunpack.c.h.b16 %v103
    %v364 = vunpack.c.l.b16 %v104
    %v365 = vunpack.c.h.b16 %v104
    %v366 = vunpack.c.l.b16 %v105
    %v367 = vunpack.c.h.b16 %v105
    %v368 = vunpack.c.l.b16 %v106
    %v369 = vunpack.c.h.b16 %v106
    %v370 = vunpack.c.l.b16 %v107
    %v371 = vunpack.c.h.b16 %v107
    %v372 = vunpack.c.l.b16 %v108
    %v373 = vunpack.c.h.b16 %v108
    %v374 = vunpack.c.l.b16 %v109
    %v375 = vunpack.c.h.b16 %v109
    %v376 = vunpack.c.l.b16 %v110
    %v377 = vunpack.c.h.b16 %v110
    %v378 = vunpack.c.l.b16 %v111
    %v379 = vunpack.c.h.b16 %v111
    %v380 = vunpack.c.l.b16 %v112
    %v381 = vunpack.c.h.b16 %v112
    %v382 = vunpack.c.l.b16 %v113
    %v383 = vunpack.c.h.b16 %v113
    %v384 = vunpack.c.l.b16 %v114
    %v385 = vunpack.c.h.b16 %v114
    %v386 = vunpack.c.l.b16 %v115
    %v387 = vunpack.c.h.b16 %v115
    %v388 = vunpack.c.l.b16 %v116
    %v389 = vunpack.c.h.b16 %v116
    %v390 = vunpack.c.l.b16 %v117
    %v391 = vunpack.c.h.b16 %v117
    %v392 = vunpack.c.l.b16 %v118
    %v393 = vunpack.c.h.b16 %v118
    %v394 = vunpack.c.l.b16 %v119
    %v395 = vunpack.c.h.b16 %v119
    %v396 = vunpack.c.l.b16 %v120
    %v397 = vunpack.c.h.b16 %v120
    %v398 = vunpack.c.l.b16 %v121
    %v399 = vunpack.c.h.b16 %v121
    %v400 = vunpack.c.l.b16 %v122
    %v401 = vunpack.c.h.b16 %v122
    %v402 = vunpack.c.l.b16 %v123
    %v403 = vunpack.c.h.b16 %v123
    %v404 = vunpack.c.l.b16 %v124
    %v405 = vunpack.c.h.b16 %v124
    %v406 = vunpack.c.l.b16 %v125
    %v407 = vunpack.c.h.b16 %v125
    %v408 = vunpack.c.l.b16 %v126
    %v409 = vunpack.c.h.b16 %v126
    %v410 = vunpack.c.l.b16 %v127
    %v411 = vunpack.c.h.b16 %v127
    %v412 = vunpack.c.l.b16 %v128
    %v413 = vunpack.c.h.b16 %v128
    %v414 = vunpack.c.l.b16 %v129
    %v415 = vunpack.c.h.b16 %v129
    %v416 = vunpack.c.l.b16 %v130
    %v417 = vunpack.c.h.b16 %v130
    %v418 = vunpack.c.l.b16 %v131
    %v419 = vunpack.c.h.b16 %v131
    %v420 = vunpack.c.l.b16 %v132
    %v421 = vunpack.c.h.b16 %v132
    %v422 = vunpack.c.l.b16 %v133
    %v423 = vunpack.c.h.b16 %v133
    %v424 = vunpack.c.l.b16 %v134
    %v425 = vunpack.c.h.b16 %v134
    %v426 = vunpack.c.l.b16 %v135
    %v427 = vunpack.c.h.b16 %v135
    %v428 = vunpack.c.l.b16 %v136
    %v429 = vunpack.c.h.b16 %v136
    %v430 = vunpack.c.l.b16 %v137
    %v431 = vunpack.c.h.b16 %v137
    %v432 = vunpack.c.l.b16 %v138
    %v433 = vunpack.c.h.b16 %v138
    %v434 = vunpack.c.l.b16 %v139
    %v435 = vunpack.c.h.b16 %v139
    %v436 = vunpack.c.l.b16 %v140
    %v437 = vunpack.c.h.b16 %v140
    %v438 = vunpack.c.l.b16 %v141
    %v439 = vunpack.c.h.b16 %v141
    %v440 = vunpack.c.l.b16 %v142
    %v441 = vunpack.c.h.b16 %v142
    %v442 = vunpack.c.l.b16 %v143
    %v443 = vunpack.c.h.b16 %v143
    %v444 = vunpack.c.l.b16 %v144
    %v445 = vunpack.c.h.b16 %v144
    %v446 = vunpack.c.l.b16 %v145
    %v447 = vunpack.c.h.b16 %v145
    %v448 = vunpack.c.l.b16 %v146
    %v449 = vunpack.c.h.b16 %v146
    %v450 = vunpack.c.l.b16 %v147
    %v451 = vunpack.c.h.b16 %v147
    %v452 = vunpack.c.l.b16 %v148
    %v453 = vunpack.c.h.b16 %v148
    %v454 = vunpack.c.l.b16 %v149
    %v455 = vunpack.c.h.b16 %v149
    %v456 = vpack.c.b16 %v262, %v260
    %v457 = vpack.c.b16 %v263, %v261
    %v458 = vpack.c.b16 %v266, %v264
    %v459 = vpack.c.b16 %v267, %v265
    %v460 = vpack.c.b16 %v270, %v268
    %v461 = vpack.c.b16 %v271, %v269
    %v462 = vpack.c.b16 %v274, %v272
    %v463 = vpack.c.b16 %v275, %v273
    %v464 = vpack.c.b16 %v278, %v276
    %v465 = vpack.c.b16 %v279, %v277
    %v466 = vpack.c.b16 %v282, %v280
    %v467 = vpack.c.b16 %v283, %v281
    %v468 = vpack.c.b16 %v286, %v284
    %v469 = vpack.c.b16 %v287, %v285
    %v470 = vpack.c.b16 %v290, %v288
    %v471 = vpack.c.b16 %v291, %v289
    %v472 = vpack.c.b16 %v294, %v292
    %v473 = vpack.c.b16 %v295, %v293
    %v474 = vpack.c.b16 %v298, %v296
    %v475 = vpack.c.b16 %v299, %v297
    %v476 = vpack.c.b16 %v302, %v300
    %v477 = vpack.c.b16 %v303, %v301
    %v478 = vpack.c.b16 %v306, %v304
    %v479 = vpack.c.b16 %v307, %v305
    %v480 = vpack.c.b16 %v310, %v308
    %v481 = vpack.c.b16 %v311, %v309
    %v482 = vpack.c.b16 %v314, %v312
    %v483 = vpack.c.b16 %v315, %v313
    %v484 = vpack.c.b16 %v318, %v316
    %v485 = vpack.c.b16 %v319, %v317
    %v486 = vpack.c.b16 %v322, %v320
    %v487 = vpack.c.b16 %v323, %v321
    %v488 = vpack.c.b16 %v326, %v324
    %v489 = vpack.c.b16 %v327, %v325
    %v490 = vpack.c.b16 %v330, %v328
    %v491 = vpack.c.b16 %v331, %v329
    %v492 = vpack.c.b16 %v334, %v332
    %v493 = vpack.c.b16 %v335, %v333
    %v494 = vpack.c.b16 %v338, %v336
    %v495 = vpack.c.b16 %v339, %v337
    %v496 = vpack.c.b16 %v342, %v340
    %v497 = vpack.c.b16 %v343, %v341
    %v498 = vpack.c.b16 %v346, %v344
    %v499 = vpack.c.b16 %v347, %v345
    %v500 = vpack.c.b16 %v350, %v348
    %v501 = vpack.c.b16 %v351, %v349
    %v502 = vpack.c.b16 %v354, %v352
    %v503 = vpack.c.b16 %v355, %v353
    %v504 = vpack.c.b16 %v358, %v356
    %v505 = vpack.c.b16 %v359, %v357
    %v506 = vpack.c.b16 %v362, %v360
    %v507 = vpack.c.b16 %v363, %v361
    %v508 = vpack.c.b16 %v366, %v364
    %v509 = vpack.c.b16 %v367, %v365
    %v510 = vpack.c.b16 %v370, %v368
    %v511 = vpack.c.b16 %v371, %v369
    %v512 = vpack.c.b16 %v374, %v372
    %v513 = vpack.c.b16 %v375, %v373
    %v514 = vpack.c.b16 %v378, %v376
    %v515 = vpack.c.b16 %v379, %v377
    %v516 = vpack.c.b16 %v382, %v380
    %v517 = vpack.c.b16 %v383, %v381
    %v518 = vpack.c.b16 %v386, %v384
    %v519 = vpack.c.b16 %v387, %v385
    %v520 = vpack.c.b16 %v390, %v388
    %v521 = vpack.c.b16 %v391, %v389
    %v522 = vpack.c.b16 %v394, %v392
    %v523 = vpack.c.b16 %v395, %v393
    %v524 = vpack.c.b16 %v398, %v396
    %v525 = vpack.c.b16 %v399, %v397
    %v526 = vpack.c.b16 %v402, %v400
    %v527 = vpack.c.b16 %v403, %v401
    %v528 = vpack.c.b16 %v406, %v404
    %v529 = vpack.c.b16 %v407, %v405
    %v530 = vpack.c.b16 %v410, %v408
    %v531 = vpack.c.b16 %v411, %v409
    %v532 = vpack.c.b16 %v414, %v412
    %v533 = vpack.c.b16 %v415, %v413
    %v534 = vpack.c.b16 %v418, %v416
    %v535 = vpack.c.b16 %v419, %v417
    %v536 = vpack.c.b16 %v422, %v420
    %v537 = vpack.c.b16 %v423, %v421
    %v538 = vpack.c.b16 %v426, %v424
    %v539 = vpack.c.b16 %v427, %v425
    %v540 = vpack.c.b16 %v430, %v428
    %v541 = vpack.c.b16 %v431, %v429
    %v542 = vpack.c.b16 %v434, %v432
    %v543 = vpack.c.b16 %v435, %v433
    %v544 = vpack.c.b16 %v438, %v436
    %v545 = vpack.c.b16 %v439, %v437
    %v546 = vpack.c.b16 %v442, %v440
    %v547 = vpack.c.b16 %v443, %v441
    %v548 = vpack.c.b16 %v446, %v444
    %v549 = vpack.c.b16 %v447, %v445
    %v550 = vpack.c.b16 %v450, %v448
    %v551 = vpack.c.b16 %v451, %v449
    %v552 = vpack.c.b16 %v454, %v452
    %v553 = vpack.c.b16 %v455, %v453
    %vm652 = vcmask 130048
    %v654 = vsel %vm652, %v51, 0
    %656 = vmatprep.subr.bf16.mxu0 %v457
    %657 = vmatpush1.bf16.msra.mxu0 %v456
    %658 = vmatprep.subr.bf16.mxu0 %v459
    %659 = vmatpush1.bf16.msra.mxu0 %v458
    %660 = vmatprep.subr.bf16.mxu0 %v461
    %661 = vmatpush1.bf16.msra.mxu0 %v460
    %662 = vmatprep.subr.bf16.mxu0 %v463
    %663 = vmatpush1.bf16.msra.mxu0 %v462
    %664 = vmatprep.subr.bf16.mxu0 %v465
    %665 = vmatpush1.bf16.msra.mxu0 %v464
    %666 = vmatprep.subr.bf16.mxu0 %v467
    %667 = vmatpush1.bf16.msra.mxu0 %v466
    %668 = vmatprep.subr.bf16.mxu0 %v469
    %669 = vmatpush1.bf16.msra.mxu0 %v468
    %670 = vmatprep.subr.bf16.mxu0 %v471
    %671 = vmatpush1.bf16.msra.mxu0 %v470
    %672 = vmatprep.subr.bf16.mxu0 %v473
    %673 = vmatpush1.bf16.msra.mxu0 %v472
    %674 = vmatprep.subr.bf16.mxu0 %v475
    %675 = vmatpush1.bf16.msra.mxu0 %v474
    %676 = vmatprep.subr.bf16.mxu0 %v477
    %677 = vmatpush1.bf16.msra.mxu0 %v476
    %678 = vmatprep.subr.bf16.mxu0 %v479
    %679 = vmatpush1.bf16.msra.mxu0 %v478
    %680 = vmatprep.subr.bf16.mxu0 %v481
    %681 = vmatpush1.bf16.msra.mxu0 %v480
    %682 = vmatprep.subr.bf16.mxu0 %v483
    %683 = vmatpush1.bf16.msra.mxu0 %v482
    %684 = vmatprep.subr.bf16.mxu0 %v485
    %685 = vmatpush1.bf16.msra.mxu0 %v484
    %686 = vmatprep.subr.bf16.mxu0 %v487
    %687 = vmatpush1.bf16.msra.mxu0 %v486
    %688 = vmatprep.mubr.bf16.mxu0 %v46
    %689 = vmatmul.mubr.bf16.gmra.mrb[0].mxu0 %v45
    %v690 = vpop.f32.mrb[0].mxu0
    %v691 = vadd.f32 %v155, %v690
    %v692 = vpop.f32.mrb[0].mxu0
    %v693 = vadd.f32 %v159, %v692
    %v694 = vpop.f32.mrb[0].mxu0
    %v695 = vpop.f32.mrb[0].mxu0
    %696 = vdwg.mxu0
    %697 = vmatprep.subr.bf16.mxu0 %v489
    %698 = vmatpush1.bf16.msra.mxu0 %v488
    %699 = vmatprep.subr.bf16.mxu0 %v491
    %700 = vmatpush1.bf16.msra.mxu0 %v490
    %701 = vmatprep.subr.bf16.mxu0 %v493
    %702 = vmatpush1.bf16.msra.mxu0 %v492
    %703 = vmatprep.subr.bf16.mxu0 %v495
    %704 = vmatpush1.bf16.msra.mxu0 %v494
    %705 = vmatprep.subr.bf16.mxu0 %v497
    %706 = vmatpush1.bf16.msra.mxu0 %v496
    %707 = vmatprep.subr.bf16.mxu0 %v499
    %708 = vmatpush1.bf16.msra.mxu0 %v498
    %709 = vmatprep.subr.bf16.mxu0 %v501
    %710 = vmatpush1.bf16.msra.mxu0 %v500
    %711 = vmatprep.subr.bf16.mxu0 %v503
    %712 = vmatpush1.bf16.msra.mxu0 %v502
    %713 = vmatprep.subr.bf16.mxu0 %v505
    %714 = vmatpush1.bf16.msra.mxu0 %v504
    %715 = vmatprep.subr.bf16.mxu0 %v507
    %716 = vmatpush1.bf16.msra.mxu0 %v506
    %717 = vmatprep.subr.bf16.mxu0 %v509
    %718 = vmatpush1.bf16.msra.mxu0 %v508
    %719 = vmatprep.subr.bf16.mxu0 %v511
    %720 = vmatpush1.bf16.msra.mxu0 %v510
    %721 = vmatprep.subr.bf16.mxu0 %v513
    %722 = vmatpush1.bf16.msra.mxu0 %v512
    %723 = vmatprep.subr.bf16.mxu0 %v515
    %724 = vmatpush1.bf16.msra.mxu0 %v514
    %725 = vmatprep.subr.bf16.mxu0 %v517
    %726 = vmatpush1.bf16.msra.mxu0 %v516
    %727 = vmatprep.subr.bf16.mxu0 %v519
    %728 = vmatpush1.bf16.msra.mxu0 %v518
    %729 = vmatprep.mubr.bf16.mxu0 %v48
    %730 = vmatmul.mubr.bf16.gmra.mrb[0].mxu0 %v47
    %v731 = vpop.f32.mrb[0].mxu0
    %v732 = vadd.f32 %v691, %v731
    %v733 = vpop.f32.mrb[0].mxu0
    %v734 = vadd.f32 %v693, %v733
    %v735 = vpop.f32.mrb[0].mxu0
    %v736 = vpop.f32.mrb[0].mxu0
    %737 = vdwg.mxu0
    %738 = vmatprep.subr.bf16.mxu0 %v521
    %739 = vmatpush1.bf16.msra.mxu0 %v520
    %740 = vmatprep.subr.bf16.mxu0 %v523
    %741 = vmatpush1.bf16.msra.mxu0 %v522
    %742 = vmatprep.subr.bf16.mxu0 %v525
    %743 = vmatpush1.bf16.msra.mxu0 %v524
    %744 = vmatprep.subr.bf16.mxu0 %v527
    %745 = vmatpush1.bf16.msra.mxu0 %v526
    %746 = vmatprep.subr.bf16.mxu0 %v529
    %747 = vmatpush1.bf16.msra.mxu0 %v528
    %748 = vmatprep.subr.bf16.mxu0 %v531
    %749 = vmatpush1.bf16.msra.mxu0 %v530
    %750 = vmatprep.subr.bf16.mxu0 %v533
    %751 = vmatpush1.bf16.msra.mxu0 %v532
    %752 = vmatprep.subr.bf16.mxu0 %v535
    %753 = vmatpush1.bf16.msra.mxu0 %v534
    %754 = vmatprep.subr.bf16.mxu0 %v537
    %755 = vmatpush1.bf16.msra.mxu0 %v536
    %756 = vmatprep.subr.bf16.mxu0 %v539
    %757 = vmatpush1.bf16.msra.mxu0 %v538
    %758 = vmatprep.subr.bf16.mxu0 %v541
    %759 = vmatpush1.bf16.msra.mxu0 %v540
    %760 = vmatprep.subr.bf16.mxu0 %v543
    %761 = vmatpush1.bf16.msra.mxu0 %v542
    %762 = vmatprep.subr.bf16.mxu0 %v545
    %763 = vmatpush1.bf16.msra.mxu0 %v544
    %764 = vmatprep.subr.bf16.mxu0 %v547
    %765 = vmatpush1.bf16.msra.mxu0 %v546
    %766 = vmatprep.subr.bf16.mxu0 %v549
    %767 = vmatpush1.bf16.msra.mxu0 %v548
    %768 = vmatprep.subr.bf16.mxu0 %v551
    %769 = vmatpush1.bf16.msra.mxu0 %v550
    %770 = vmatprep.mubr.bf16.mxu0 %v50
    %771 = vmatmul.mubr.bf16.gmra.mrb[0].mxu0 %v49
    %v772 = vpop.f32.mrb[0].mxu0
    %v773 = vadd.f32 %v732, %v772
    %v774 = vpop.f32.mrb[0].mxu0
    %v775 = vadd.f32 %v734, %v774
    %v776 = vpop.f32.mrb[0].mxu0
    %v777 = vpop.f32.mrb[0].mxu0
    %778 = vdwg.mxu0
    %779 = vmatprep.subr.bf16.mxu0 %v553
    %780 = vmatpush1.bf16.msra.mxu0 %v552
    %781 = vmatprep.subr.bf16.mxu0 0
    %782 = vmatpush1.bf16.msra.mxu0 0
    %783 = vmatprep.subr.bf16.mxu0 0
    %784 = vmatpush1.bf16.msra.mxu0 0
    %785 = vmatprep.subr.bf16.mxu0 0
    %786 = vmatpush1.bf16.msra.mxu0 0
    %787 = vmatprep.subr.bf16.mxu0 0
    %788 = vmatpush1.bf16.msra.mxu0 0
    %789 = vmatprep.subr.bf16.mxu0 0
    %790 = vmatpush1.bf16.msra.mxu0 0
    %791 = vmatprep.subr.bf16.mxu0 0
    %792 = vmatpush1.bf16.msra.mxu0 0
    %793 = vmatprep.subr.bf16.mxu0 0
    %794 = vmatpush1.bf16.msra.mxu0 0
    %795 = vmatprep.subr.bf16.mxu0 0
    %796 = vmatpush1.bf16.msra.mxu0 0
    %797 = vmatprep.subr.bf16.mxu0 0
    %798 = vmatpush1.bf16.msra.mxu0 0
    %799 = vmatprep.subr.bf16.mxu0 0
    %800 = vmatpush1.bf16.msra.mxu0 0
    %801 = vmatprep.subr.bf16.mxu0 0
    %802 = vmatpush1.bf16.msra.mxu0 0
    %803 = vmatprep.subr.bf16.mxu0 0
    %804 = vmatpush1.bf16.msra.mxu0 0
    %805 = vmatprep.subr.bf16.mxu0 0
    %806 = vmatpush1.bf16.msra.mxu0 0
    %807 = vmatprep.subr.bf16.mxu0 0
    %808 = vmatpush1.bf16.msra.mxu0 0
    %809 = vmatprep.subr.bf16.mxu0 0
    %810 = vmatpush1.bf16.msra.mxu0 0
    %811 = vmatprep.mubr.bf16.mxu0 0
    %812 = vmatmul.mubr.bf16.gmra.mrb[0].mxu0 %v654
    %v813 = vpop.f32.mrb[0].mxu0
    %v814 = vadd.f32 %v773, %v813
    %v815 = vpop.f32.mrb[0].mxu0
    %v816 = vadd.f32 %v775, %v815
    %v817 = vpop.f32.mrb[0].mxu0
    %v818 = vpop.f32.mrb[0].mxu0
    %819 = vdwg.mxu0
    %v820 = vmax.f32 %v814, 0.0
    %v821 = vmax.f32 %v816, 0.0
    %v822 = vpack.c.bf16 %v820, %v820
    %v823 = vpack.c.bf16 %v821, %v821
    %v824 = vld [vmem:[%s3] sm:$0xf]
    %v825 = vld [vmem:[%s3 + $0x4] sm:$0xf]
    %v826 = vld [vmem:[%s3 + $0x8] sm:$0xf]
    %v827 = vld [vmem:[%s3 + $0xc] sm:$0xf]
    %v828 = vld [vmem:[%s3 + $0x10] sm:$0xf]
    %v829 = vld [vmem:[%s3 + $0x14] sm:$0xf]
    %v830 = vld [vmem:[%s3 + $0x18] sm:$0xf]
    %v831 = vld [vmem:[%s3 + $0x1c] sm:$0xf]
    %v832 = vld [vmem:[%s3 + $0x20] sm:$0xf]
    %v833 = vld [vmem:[%s3 + $0x24] sm:$0xf]
    %v834 = vld [vmem:[%s3 + $0x28] sm:$0xf]
    %v835 = vld [vmem:[%s3 + $0x2c] sm:$0xf]
    %v836 = vld [vmem:[%s3 + $0x30] sm:$0xf]
    %v837 = vld [vmem:[%s3 + $0x34] sm:$0xf]
    %v838 = vld [vmem:[%s3 + $0x38] sm:$0xf]
    %v839 = vld [vmem:[%s3 + $0x3c] sm:$0xf]
    %v840 = vld [vmem:[%s3 + $0x40] sm:$0xf]
    %v841 = vld [vmem:[%s3 + $0x44] sm:$0xf]
    %v842 = vld [vmem:[%s3 + $0x48] sm:$0xf]
    %v843 = vld [vmem:[%s3 + $0x4c] sm:$0xf]
    %v844 = vld [vmem:[%s3 + $0x50] sm:$0xf]
    %v845 = vld [vmem:[%s3 + $0x54] sm:$0xf]
    %v846 = vld [vmem:[%s3 + $0x58] sm:$0xf]
    %v847 = vld [vmem:[%s3 + $0x5c] sm:$0xf]
    %v848 = vld [vmem:[%s3 + $0x60] sm:$0xf]
    %v849 = vld [vmem:[%s3 + $0x64] sm:$0xf]
    %v850 = vld [vmem:[%s3 + $0x68] sm:$0xf]
    %v851 = vld [vmem:[%s3 + $0x6c] sm:$0xf]
    %v852 = vld [vmem:[%s3 + $0x70] sm:$0xf]
    %v853 = vld [vmem:[%s3 + $0x74] sm:$0xf]
    %v854 = vld [vmem:[%s3 + $0x78] sm:$0xf]
    %v855 = vld [vmem:[%s3 + $0x7c] sm:$0xf]
    %v856 = vld [vmem:[%s4] sm:$0x1]
    %v858 = vlaneseq
    %v859 = vshrl.u32 %v858, 7
    %v860 = vsub.s32 0, %v859
    %v861 = vrot.slane %v856, %v860
    %v895 = vunpack.c.l.b16 %v824
    %v896 = vunpack.c.l.b16 %v825
    %v897 = vunpack.c.l.b16 %v826
    %v898 = vunpack.c.l.b16 %v827
    %v899 = vunpack.c.l.b16 %v828
    %v900 = vunpack.c.l.b16 %v829
    %v901 = vunpack.c.l.b16 %v830
    %v902 = vunpack.c.l.b16 %v831
    %v903 = vunpack.c.l.b16 %v832
    %v904 = vunpack.c.l.b16 %v833
    %v905 = vunpack.c.l.b16 %v834
    %v906 = vunpack.c.l.b16 %v835
    %v907 = vunpack.c.l.b16 %v836
    %v908 = vunpack.c.l.b16 %v837
    %v909 = vunpack.c.l.b16 %v838
    %v910 = vunpack.c.l.b16 %v839
    %v911 = vunpack.c.l.b16 %v840
    %v912 = vunpack.c.l.b16 %v841
    %v913 = vunpack.c.l.b16 %v842
    %v914 = vunpack.c.l.b16 %v843
    %v915 = vunpack.c.l.b16 %v844
    %v916 = vunpack.c.l.b16 %v845
    %v917 = vunpack.c.l.b16 %v846
    %v918 = vunpack.c.l.b16 %v847
    %v919 = vunpack.c.l.b16 %v848
    %v920 = vunpack.c.l.b16 %v849
    %v921 = vunpack.c.l.b16 %v850
    %v922 = vunpack.c.l.b16 %v851
    %v923 = vunpack.c.l.b16 %v852
    %v924 = vunpack.c.l.b16 %v853
    %v925 = vunpack.c.l.b16 %v854
    %v926 = vunpack.c.l.b16 %v855
    %v927 = vpack.c.b16 %v896, %v895
    %v928 = vpack.c.b16 %v898, %v897
    %v929 = vpack.c.b16 %v900, %v899
    %v930 = vpack.c.b16 %v902, %v901
    %v931 = vpack.c.b16 %v904, %v903
    %v932 = vpack.c.b16 %v906, %v905
    %v933 = vpack.c.b16 %v908, %v907
    %v934 = vpack.c.b16 %v910, %v909
    %v935 = vpack.c.b16 %v912, %v911
    %v936 = vpack.c.b16 %v914, %v913
    %v937 = vpack.c.b16 %v916, %v915
    %v938 = vpack.c.b16 %v918, %v917
    %v939 = vpack.c.b16 %v920, %v919
    %v940 = vpack.c.b16 %v922, %v921
    %v941 = vpack.c.b16 %v924, %v923
    %v942 = vpack.c.b16 %v926, %v925
    %959 = vmatprep.subr.bf16.mxu0 0
    %960 = vmatpush1.bf16.msra.mxu0 %v927
    %961 = vmatprep.subr.bf16.mxu0 0
    %962 = vmatpush1.bf16.msra.mxu0 %v928
    %963 = vmatprep.subr.bf16.mxu0 0
    %964 = vmatpush1.bf16.msra.mxu0 %v929
    %965 = vmatprep.subr.bf16.mxu0 0
    %966 = vmatpush1.bf16.msra.mxu0 %v930
    %967 = vmatprep.subr.bf16.mxu0 0
    %968 = vmatpush1.bf16.msra.mxu0 %v931
    %969 = vmatprep.subr.bf16.mxu0 0
    %970 = vmatpush1.bf16.msra.mxu0 %v932
    %971 = vmatprep.subr.bf16.mxu0 0
    %972 = vmatpush1.bf16.msra.mxu0 %v933
    %973 = vmatprep.subr.bf16.mxu0 0
    %974 = vmatpush1.bf16.msra.mxu0 %v934
    %975 = vmatprep.subr.bf16.mxu0 0
    %976 = vmatpush1.bf16.msra.mxu0 %v935
    %977 = vmatprep.subr.bf16.mxu0 0
    %978 = vmatpush1.bf16.msra.mxu0 %v936
    %979 = vmatprep.subr.bf16.mxu0 0
    %980 = vmatpush1.bf16.msra.mxu0 %v937
    %981 = vmatprep.subr.bf16.mxu0 0
    %982 = vmatpush1.bf16.msra.mxu0 %v938
    %983 = vmatprep.subr.bf16.mxu0 0
    %984 = vmatpush1.bf16.msra.mxu0 %v939
    %985 = vmatprep.subr.bf16.mxu0 0
    %986 = vmatpush1.bf16.msra.mxu0 %v940
    %987 = vmatprep.subr.bf16.mxu0 0
    %988 = vmatpush1.bf16.msra.mxu0 %v941
    %989 = vmatprep.subr.bf16.mxu0 0
    %990 = vmatpush1.bf16.msra.mxu0 %v942
    %991 = vmatprep.mubr.bf16.mxu0 %v823
    %992 = vmatmul.mubr.bf16.gmra.mrb[0].mxu0 %v822
    %v993 = vpop.f32.mrb[0].mxu0
    %v994 = vadd.f32 %v861, %v993
    %v995 = vpop.f32.mrb[0].mxu0
    %v996 = vpop.f32.mrb[0].mxu0
    %v997 = vpop.f32.mrb[0].mxu0
    %998 = vdwg.mxu0
    %999 = vst.msk [vmem:[#allocation4] sm:$0xff] %vm652, %v994
    %v1000 = vlaneseq
    %v1001 = vshrl.u32 %v1000, 7
    %v1003 = vcombine.high %v994, %v994
    %v1005 = vunpack.c.l.s4 1966171168
    %v1006 = vunpack.c.0.s8 %v1005
    %v1007 = vlaneseq
    %v1008 = vshrl.u32 %v1007, 7
    %v1009 = vsub.s32 %v1006, %v1008
    %v1010 = vrot.slane %v994, %v1009
    %v1012 = vunpack.c.l.s4 1966171168
    %v1013 = vunpack.c.0.s8 %v1012
    %v1014 = vlaneseq
    %v1015 = vshrl.u32 %v1014, 7
    %v1016 = vsub.s32 %v1013, %v1015
    %v1017 = vrot.slane %v1003, %v1016
    %v1018 = vcombine.high %v1010, %v1010
    %v1019 = vcombine.high %v1017, %v1017
    %v1021 = vunpack.c.l.s4 1966171168
    %v1022 = vunpack.c.0.s8 %v1021
    %v1023 = vlaneseq
    %v1024 = vshrl.u32 %v1023, 7
    %v1025 = vsub.s32 %v1022, %v1024
    %v1026 = vrot.slane %v1010, %v1025
    %v1028 = vunpack.c.l.s4 1966171168
    %v1029 = vunpack.c.0.s8 %v1028
    %v1030 = vlaneseq
    %v1031 = vshrl.u32 %v1030, 7
    %v1032 = vsub.s32 %v1029, %v1031
    %v1033 = vrot.slane %v1017, %v1032
    %v1035 = vunpack.c.l.s4 1966171168
    %v1036 = vunpack.c.0.s8 %v1035
    %v1037 = vlaneseq
    %v1038 = vshrl.u32 %v1037, 7
    %v1039 = vsub.s32 %v1036, %v1038
    %v1040 = vrot.slane %v1018, %v1039
    %v1042 = vunpack.c.l.s4 1966171168
    %v1043 = vunpack.c.0.s8 %v1042
    %v1044 = vlaneseq
    %v1045 = vshrl.u32 %v1044, 7
    %v1046 = vsub.s32 %v1043, %v1045
    %v1047 = vrot.slane %v1019, %v1046
    %v1048 = vcombine.high %v1026, %v1026
    %v1049 = vcombine.high %v1033, %v1033
    %v1050 = vcombine.high %v1040, %v1040
    %v1051 = vcombine.high %v1047, %v1047
    %v1052 = vlaneseq
    %v1053 = vshrl.u32 %v1052, 7
    %v1054 = vsub.s32 0, %v1053
    %v1055 = vrot.slane %v1026, %v1054
    %v1056 = vlaneseq
    %v1057 = vshrl.u32 %v1056, 7
    %v1058 = vsub.s32 0, %v1057
    %v1059 = vrot.slane %v1040, %v1058
    %v1060 = vlaneseq
    %v1061 = vshrl.u32 %v1060, 7
    %v1062 = vsub.s32 0, %v1061
    %v1063 = vrot.slane %v1048, %v1062
    %v1064 = vlaneseq
    %v1065 = vshrl.u32 %v1064, 7
    %v1066 = vsub.s32 0, %v1065
    %v1067 = vrot.slane %v1050, %v1066
    %v1068 = vlaneseq
    %v1069 = vshrl.u32 %v1068, 7
    %v1070 = vsub.s32 0, %v1069
    %v1071 = vrot.slane %v1033, %v1070
    %v1072 = vlaneseq
    %v1073 = vshrl.u32 %v1072, 7
    %v1074 = vsub.s32 0, %v1073
    %v1075 = vrot.slane %v1047, %v1074
    %v1076 = vlaneseq
    %v1077 = vshrl.u32 %v1076, 7
    %v1078 = vsub.s32 0, %v1077
    %v1079 = vrot.slane %v1049, %v1078
    %v1080 = vlaneseq
    %v1081 = vshrl.u32 %v1080, 7
    %v1082 = vsub.s32 0, %v1081
    %v1083 = vrot.slane %v1051, %v1082
    %vm1092 = vcmp.gt.f32.partialorder %v994, %v1055
    %vm1093 = vcmp.gt.f32.partialorder %v994, %v1059
    %vm1094 = vcmp.gt.f32.partialorder %v994, %v1063
    %vm1095 = vcmp.gt.f32.partialorder %v994, %v1067
    %vm1096 = vcmp.gt.f32.partialorder %v994, %v1071
    %vm1097 = vcmp.gt.f32.partialorder %v994, %v1075
    %vm1098 = vcmp.gt.f32.partialorder %v994, %v1079
    %vm1099 = vcmp.gt.f32.partialorder %v994, %v1083
    %vm1100 = vcmp.eq.f32.partialorder %v994, %v1055
    %vm1101 = vcmp.eq.f32.partialorder %v994, %v1059
    %vm1102 = vcmp.eq.f32.partialorder %v994, %v1063
    %vm1103 = vcmp.eq.f32.partialorder %v994, %v1067
    %vm1104 = vcmp.eq.f32.partialorder %v994, %v1071
    %vm1105 = vcmp.eq.f32.partialorder %v994, %v1075
    %vm1106 = vcmp.eq.f32.partialorder %v994, %v1079
    %vm1107 = vcmp.eq.f32.partialorder %v994, %v1083
    %vm1108 = vcmp.lt.s32.totalorder %v1001, 0
    %vm1109 = vcmp.lt.s32.totalorder %v1001, 1
    %vm1110 = vcmp.lt.s32.totalorder %v1001, 2
    %vm1111 = vcmp.lt.s32.totalorder %v1001, 3
    %vm1112 = vcmp.lt.s32.totalorder %v1001, 4
    %vm1113 = vcmp.lt.s32.totalorder %v1001, 5
    %vm1114 = vcmp.lt.s32.totalorder %v1001, 6
    %vm1115 = vcmp.lt.s32.totalorder %v1001, 7
    %v1116 = vsel %vm1108, 1, 0
    %v1117 = vsel %vm1109, 1, 0
    %v1118 = vsel %vm1110, 1, 0
    %v1119 = vsel %vm1111, 1, 0
    %v1120 = vsel %vm1112, 1, 0
    %v1121 = vsel %vm1113, 1, 0
    %v1122 = vsel %vm1114, 1, 0
    %v1123 = vsel %vm1115, 1, 0
    %vm1124 = vcmp.eq.s32.totalorder %v1116, 1
    %vm1125 = vcmp.eq.s32.totalorder %v1117, 1
    %vm1126 = vcmp.eq.s32.totalorder %v1118, 1
    %vm1127 = vcmp.eq.s32.totalorder %v1119, 1
    %vm1128 = vcmp.eq.s32.totalorder %v1120, 1
    %vm1129 = vcmp.eq.s32.totalorder %v1121, 1
    %vm1130 = vcmp.eq.s32.totalorder %v1122, 1
    %vm1131 = vcmp.eq.s32.totalorder %v1123, 1
    %vm1132 = vmand %vm1100, %vm1124
    %vm1133 = vmand %vm1101, %vm1125
    %vm1134 = vmand %vm1102, %vm1126
    %vm1135 = vmand %vm1103, %vm1127
    %vm1136 = vmand %vm1104, %vm1128
    %vm1137 = vmand %vm1105, %vm1129
    %vm1138 = vmand %vm1106, %vm1130
    %vm1139 = vmand %vm1107, %vm1131
    %vm1140 = vmor %vm1092, %vm1132
    %vm1141 = vmor %vm1093, %vm1133
    %vm1142 = vmor %vm1094, %vm1134
    %vm1143 = vmor %vm1095, %vm1135
    %vm1144 = vmor %vm1096, %vm1136
    %vm1145 = vmor %vm1097, %vm1137
    %vm1146 = vmor %vm1098, %vm1138
    %vm1147 = vmor %vm1099, %vm1139
    %v1148 = vsel %vm1140, 1, 0
    %v1149 = vsel %vm1141, 1, 0
    %v1150 = vsel %vm1142, 1, 0
    %v1151 = vsel %vm1143, 1, 0
    %v1152 = vsel %vm1144, 1, 0
    %v1153 = vsel %vm1145, 1, 0
    %v1154 = vsel %vm1146, 1, 0
    %v1155 = vsel %vm1147, 1, 0
    %v1156 = vsel %vm652, %v1148, 0
    %v1157 = vrot.slane %v1156, 4
    %v1158 = vadd.s32 %v1156, %v1157
    %v1159 = vrot.slane %v1158, 2
    %v1160 = vadd.s32 %v1158, %v1159
    %v1161 = vrot.slane %v1160, 1
    %v1162 = vadd.s32 %v1160, %v1161
    %v1163 = vsel %vm652, %v1149, 0
    %v1164 = vrot.slane %v1163, 4
    %v1165 = vadd.s32 %v1163, %v1164
    %v1166 = vrot.slane %v1165, 2
    %v1167 = vadd.s32 %v1165, %v1166
    %v1168 = vrot.slane %v1167, 1
    %v1169 = vadd.s32 %v1167, %v1168
    %v1170 = vsel %vm652, %v1150, 0
    %v1171 = vrot.slane %v1170, 4
    %v1172 = vadd.s32 %v1170, %v1171
    %v1173 = vrot.slane %v1172, 2
    %v1174 = vadd.s32 %v1172, %v1173
    %v1175 = vrot.slane %v1174, 1
    %v1176 = vadd.s32 %v1174, %v1175
    %v1177 = vsel %vm652, %v1151, 0
    %v1178 = vrot.slane %v1177, 4
    %v1179 = vadd.s32 %v1177, %v1178
    %v1180 = vrot.slane %v1179, 2
    %v1181 = vadd.s32 %v1179, %v1180
    %v1182 = vrot.slane %v1181, 1
    %v1183 = vadd.s32 %v1181, %v1182
    %v1184 = vsel %vm652, %v1152, 0
    %v1185 = vrot.slane %v1184, 4
    %v1186 = vadd.s32 %v1184, %v1185
    %v1187 = vrot.slane %v1186, 2
    %v1188 = vadd.s32 %v1186, %v1187
    %v1189 = vrot.slane %v1188, 1
    %v1190 = vadd.s32 %v1188, %v1189
    %v1191 = vsel %vm652, %v1153, 0
    %v1192 = vrot.slane %v1191, 4
    %v1193 = vadd.s32 %v1191, %v1192
    %v1194 = vrot.slane %v1193, 2
    %v1195 = vadd.s32 %v1193, %v1194
    %v1196 = vrot.slane %v1195, 1
    %v1197 = vadd.s32 %v1195, %v1196
    %v1198 = vsel %vm652, %v1154, 0
    %v1199 = vrot.slane %v1198, 4
    %v1200 = vadd.s32 %v1198, %v1199
    %v1201 = vrot.slane %v1200, 2
    %v1202 = vadd.s32 %v1200, %v1201
    %v1203 = vrot.slane %v1202, 1
    %v1204 = vadd.s32 %v1202, %v1203
    %v1205 = vsel %vm652, %v1155, 0
    %v1206 = vrot.slane %v1205, 4
    %v1207 = vadd.s32 %v1205, %v1206
    %v1208 = vrot.slane %v1207, 2
    %v1209 = vadd.s32 %v1207, %v1208
    %v1210 = vrot.slane %v1209, 1
    %v1211 = vadd.s32 %v1209, %v1210
    %vm1212 = vcmp.lt.s32.totalorder %v1162, 4
    %vm1213 = vcmp.lt.s32.totalorder %v1169, 4
    %vm1214 = vcmp.lt.s32.totalorder %v1176, 4
    %vm1215 = vcmp.lt.s32.totalorder %v1183, 4
    %vm1216 = vcmp.lt.s32.totalorder %v1190, 4
    %vm1217 = vcmp.lt.s32.totalorder %v1197, 4
    %vm1218 = vcmp.lt.s32.totalorder %v1204, 4
    %vm1219 = vcmp.lt.s32.totalorder %v1211, 4
    %v1220 = vsel %vm1212, 1.0, -1.0
    %v1221 = vsel %vm1213, 1.0, -1.0
    %v1222 = vsel %vm1214, 1.0, -1.0
    %v1223 = vsel %vm1215, 1.0, -1.0
    %v1224 = vsel %vm1216, 1.0, -1.0
    %v1225 = vsel %vm1217, 1.0, -1.0
    %v1226 = vsel %vm1218, 1.0, -1.0
    %v1227 = vsel %vm1219, 1.0, -1.0
    %vm1236 = vcmask 1041409
    %v1237 = vsel %vm1236, %v1221, %v1220
    %vm1238 = vcmask 1042434
    %v1239 = vsel %vm1238, %v1222, %v1237
    %vm1240 = vcmask 1043459
    %v1241 = vsel %vm1240, %v1223, %v1239
    %vm1242 = vcmask 1044484
    %v1243 = vsel %vm1242, %v1224, %v1241
    %vm1244 = vcmask 1045509
    %v1245 = vsel %vm1244, %v1225, %v1243
    %vm1246 = vcmask 1046534
    %v1247 = vsel %vm1246, %v1226, %v1245
    %vm1248 = vcmask 1047559
    %v1249 = vsel %vm1248, %v1227, %v1247
    %1251 = vst.msk [vmem:[#allocation6] sm:$0xff] %vm652, %v1249
    %v1252 = vpack.c.bf16 %v1220, %v1220
    %v1253 = vpack.c.bf16 %v1221, %v1221
    %v1254 = vpack.c.bf16 %v1222, %v1222
    %v1255 = vpack.c.bf16 %v1223, %v1223
    %v1256 = vpack.c.bf16 %v1224, %v1224
    %v1257 = vpack.c.bf16 %v1225, %v1225
    %v1258 = vpack.c.bf16 %v1226, %v1226
    %v1259 = vpack.c.bf16 %v1227, %v1227
    %v1260 = vld [vmem:[%s5] sm:$0xff]
    %v1261 = vld [vmem:[%s5 + $0x8] sm:$0xff]
    %v1262 = vld [vmem:[%s6] sm:$0x3]
    %v1264 = vlaneseq
    %v1265 = vshrl.u32 %v1264, 7
    %v1266 = vsub.s32 0, %v1265
    %v1267 = vrot.slane %v1262, %v1266
    %v1268 = vlaneseq
    %v1269 = vshrl.u32 %v1268, 7
    %v1270 = vsub.s32 1, %v1269
    %v1271 = vrot.slane %v1262, %v1270
    %v1282 = vunpack.c.l.b16 %v1252
    %v1283 = vunpack.c.l.b16 %v1253
    %v1284 = vunpack.c.l.b16 %v1254
    %v1285 = vunpack.c.l.b16 %v1255
    %v1286 = vunpack.c.l.b16 %v1256
    %v1287 = vunpack.c.l.b16 %v1257
    %v1288 = vunpack.c.l.b16 %v1258
    %v1289 = vunpack.c.l.b16 %v1259
    %v1290 = vsel %vm1236, %v1283, %v1282
    %v1291 = vsel %vm1238, %v1284, %v1290
    %v1292 = vsel %vm1240, %v1285, %v1291
    %v1293 = vsel %vm1242, %v1286, %v1292
    %v1294 = vsel %vm1244, %v1287, %v1293
    %v1295 = vsel %vm1246, %v1288, %v1294
    %v1296 = vsel %vm1248, %v1289, %v1295
    %v1297 = vpack.c.b16 %v1296, %v1296
    %v1300 = vunpack.c.l.b16 %v1260
    %v1301 = vunpack.c.h.b16 %v1260
    %v1302 = vunpack.c.l.b16 %v1261
    %v1303 = vunpack.c.h.b16 %v1261
    %v1304 = vpack.c.b16 %v1302, %v1300
    %v1305 = vpack.c.b16 %v1303, %v1301
    %v1309 = vsel %vm652, %v1297, 0
    %1311 = vmatprep.subr.bf16.mxu0 %v1305
    %1312 = vmatpush1.bf16.msra.mxu0 %v1304
    %1313 = vmatprep.subr.bf16.mxu0 0
    %1314 = vmatpush1.bf16.msra.mxu0 0
    %1315 = vmatprep.subr.bf16.mxu0 0
    %1316 = vmatpush1.bf16.msra.mxu0 0
    %1317 = vmatprep.subr.bf16.mxu0 0
    %1318 = vmatpush1.bf16.msra.mxu0 0
    %1319 = vmatprep.subr.bf16.mxu0 0
    %1320 = vmatpush1.bf16.msra.mxu0 0
    %1321 = vmatprep.subr.bf16.mxu0 0
    %1322 = vmatpush1.bf16.msra.mxu0 0
    %1323 = vmatprep.subr.bf16.mxu0 0
    %1324 = vmatpush1.bf16.msra.mxu0 0
    %1325 = vmatprep.subr.bf16.mxu0 0
    %1326 = vmatpush1.bf16.msra.mxu0 0
    %1327 = vmatprep.subr.bf16.mxu0 0
    %1328 = vmatpush1.bf16.msra.mxu0 0
    %1329 = vmatprep.subr.bf16.mxu0 0
    %1330 = vmatpush1.bf16.msra.mxu0 0
    %1331 = vmatprep.subr.bf16.mxu0 0
    %1332 = vmatpush1.bf16.msra.mxu0 0
    %1333 = vmatprep.subr.bf16.mxu0 0
    %1334 = vmatpush1.bf16.msra.mxu0 0
    %1335 = vmatprep.subr.bf16.mxu0 0
    %1336 = vmatpush1.bf16.msra.mxu0 0
    %1337 = vmatprep.subr.bf16.mxu0 0
    %1338 = vmatpush1.bf16.msra.mxu0 0
    %1339 = vmatprep.subr.bf16.mxu0 0
    %1340 = vmatpush1.bf16.msra.mxu0 0
    %1341 = vmatprep.subr.bf16.mxu0 0
    %1342 = vmatpush1.bf16.msra.mxu0 0
    %1343 = vmatprep.mubr.bf16.mxu0 0
    %1344 = vmatmul.mubr.bf16.gmra.mrb[0].mxu0 %v1309
    %v1345 = vpop.f32.mrb[0].mxu0
    %v1346 = vadd.f32 %v1267, %v1345
    %v1347 = vpop.f32.mrb[0].mxu0
    %v1348 = vadd.f32 %v1271, %v1347
    %v1349 = vpop.f32.mrb[0].mxu0
    %v1350 = vpop.f32.mrb[0].mxu0
    %1351 = vdwg.mxu0
    %v1352 = vmax.f32 %v1346, 0.0
    %v1353 = vmax.f32 %v1348, 0.0
    %v1354 = vpack.c.bf16 %v1352, %v1352
    %v1355 = vpack.c.bf16 %v1353, %v1353
    %v1356 = vld [vmem:[%s7] sm:$0xff]
    %v1357 = vld [vmem:[%s7 + $0x8] sm:$0xff]
    %v1358 = vld [vmem:[%s7 + $0x10] sm:$0xff]
    %v1359 = vld [vmem:[%s7 + $0x18] sm:$0xf]
    %v1360 = vld [vmem:[%s7 + $0x1c] sm:$0xff]
    %v1361 = vld [vmem:[%s7 + $0x24] sm:$0xff]
    %v1362 = vld [vmem:[%s7 + $0x2c] sm:$0xff]
    %v1363 = vld [vmem:[%s7 + $0x34] sm:$0xf]
    %v1364 = vld [vmem:[%s7 + $0x38] sm:$0xff]
    %v1365 = vld [vmem:[%s7 + $0x40] sm:$0xff]
    %v1366 = vld [vmem:[%s7 + $0x48] sm:$0xff]
    %v1367 = vld [vmem:[%s7 + $0x50] sm:$0xf]
    %v1368 = vld [vmem:[%s7 + $0x54] sm:$0xff]
    %v1369 = vld [vmem:[%s7 + $0x5c] sm:$0xff]
    %v1370 = vld [vmem:[%s7 + $0x64] sm:$0xff]
    %v1371 = vld [vmem:[%s7 + $0x6c] sm:$0xf]
    %v1372 = vld [vmem:[%s7 + $0x70] sm:$0xff]
    %v1373 = vld [vmem:[%s7 + $0x78] sm:$0xff]
    %v1374 = vld [vmem:[%s7 + $0x80] sm:$0xff]
    %v1375 = vld [vmem:[%s7 + $0x88] sm:$0xf]
    %v1376 = vld [vmem:[%s7 + $0x8c] sm:$0xff]
    %v1377 = vld [vmem:[%s7 + $0x94] sm:$0xff]
    %v1378 = vld [vmem:[%s7 + $0x9c] sm:$0xff]
    %v1379 = vld [vmem:[%s7 + $0xa4] sm:$0xf]
    %v1380 = vld [vmem:[%s7 + $0xa8] sm:$0xff]
    %v1381 = vld [vmem:[%s7 + $0xb0] sm:$0xff]
    %v1382 = vld [vmem:[%s7 + $0xb8] sm:$0xff]
    %v1383 = vld [vmem:[%s7 + $0xc0] sm:$0xf]
    %v1384 = vld [vmem:[%s7 + $0xc4] sm:$0xff]
    %v1385 = vld [vmem:[%s7 + $0xcc] sm:$0xff]
    %v1386 = vld [vmem:[%s7 + $0xd4] sm:$0xff]
    %v1387 = vld [vmem:[%s7 + $0xdc] sm:$0xf]
    %v1388 = vld [vmem:[%s7 + $0xe0] sm:$0xff]
    %v1389 = vld [vmem:[%s7 + $0xe8] sm:$0xff]
    %v1390 = vld [vmem:[%s7 + $0xf0] sm:$0xff]
    %v1391 = vld [vmem:[%s7 + $0xf8] sm:$0xf]
    %v1392 = vld [vmem:[%s7 + $0xfc] sm:$0xff]
    %v1393 = vld [vmem:[%s7 + $0x104] sm:$0xff]
    %v1394 = vld [vmem:[%s7 + $0x10c] sm:$0xff]
    %v1395 = vld [vmem:[%s7 + $0x114] sm:$0xf]
    %v1396 = vld [vmem:[%s7 + $0x118] sm:$0xff]
    %v1397 = vld [vmem:[%s7 + $0x120] sm:$0xff]
    %v1398 = vld [vmem:[%s7 + $0x128] sm:$0xff]
    %v1399 = vld [vmem:[%s7 + $0x130] sm:$0xf]
    %v1400 = vld [vmem:[%s7 + $0x134] sm:$0xff]
    %v1401 = vld [vmem:[%s7 + $0x13c] sm:$0xff]
    %v1402 = vld [vmem:[%s7 + $0x144] sm:$0xff]
    %v1403 = vld [vmem:[%s7 + $0x14c] sm:$0xf]
    %v1404 = vld [vmem:[%s7 + $0x150] sm:$0xff]
    %v1405 = vld [vmem:[%s7 + $0x158] sm:$0xff]
    %v1406 = vld [vmem:[%s7 + $0x160] sm:$0xff]
    %v1407 = vld [vmem:[%s7 + $0x168] sm:$0xf]
    %v1408 = vld [vmem:[%s7 + $0x16c] sm:$0xff]
    %v1409 = vld [vmem:[%s7 + $0x174] sm:$0xff]
    %v1410 = vld [vmem:[%s7 + $0x17c] sm:$0xff]
    %v1411 = vld [vmem:[%s7 + $0x184] sm:$0xf]
    %v1412 = vld [vmem:[%s7 + $0x188] sm:$0xff]
    %v1413 = vld [vmem:[%s7 + $0x190] sm:$0xff]
    %v1414 = vld [vmem:[%s7 + $0x198] sm:$0xff]
    %v1415 = vld [vmem:[%s7 + $0x1a0] sm:$0xf]
    %v1416 = vld [vmem:[%s7 + $0x1a4] sm:$0xff]
    %v1417 = vld [vmem:[%s7 + $0x1ac] sm:$0xff]
    %v1418 = vld [vmem:[%s7 + $0x1b4] sm:$0xff]
    %v1419 = vld [vmem:[%s7 + $0x1bc] sm:$0xf]
    %v1420 = vld [vmem:[%s7 + $0x1c0] sm:$0xff]
    %v1421 = vld [vmem:[%s7 + $0x1c8] sm:$0xff]
    %v1422 = vld [vmem:[%s7 + $0x1d0] sm:$0xff]
    %v1423 = vld [vmem:[%s7 + $0x1d8] sm:$0xf]
    %v1424 = vld [vmem:[%s7 + $0x1dc] sm:$0xff]
    %v1425 = vld [vmem:[%s7 + $0x1e4] sm:$0xff]
    %v1426 = vld [vmem:[%s7 + $0x1ec] sm:$0xff]
    %v1427 = vld [vmem:[%s7 + $0x1f4] sm:$0xf]
    %v1428 = vld [vmem:[%s7 + $0x1f8] sm:$0xff]
    %v1429 = vld [vmem:[%s7 + $0x200] sm:$0xff]
    %v1430 = vld [vmem:[%s7 + $0x208] sm:$0xff]
    %v1431 = vld [vmem:[%s7 + $0x210] sm:$0xf]
    %v1432 = vld [vmem:[%s7 + $0x214] sm:$0xff]
    %v1433 = vld [vmem:[%s7 + $0x21c] sm:$0xff]
    %v1434 = vld [vmem:[%s7 + $0x224] sm:$0xff]
    %v1435 = vld [vmem:[%s7 + $0x22c] sm:$0xf]
    %v1436 = vld [vmem:[%s7 + $0x230] sm:$0xff]
    %v1437 = vld [vmem:[%s7 + $0x238] sm:$0xff]
    %v1438 = vld [vmem:[%s7 + $0x240] sm:$0xff]
    %v1439 = vld [vmem:[%s7 + $0x248] sm:$0xf]
    %v1440 = vld [vmem:[%s7 + $0x24c] sm:$0xff]
    %v1441 = vld [vmem:[%s7 + $0x254] sm:$0xff]
    %v1442 = vld [vmem:[%s7 + $0x25c] sm:$0xff]
    %v1443 = vld [vmem:[%s7 + $0x264] sm:$0xf]
    %v1444 = vld [vmem:[%s7 + $0x268] sm:$0xff]
    %v1445 = vld [vmem:[%s7 + $0x270] sm:$0xff]
    %v1446 = vld [vmem:[%s7 + $0x278] sm:$0xff]
    %v1447 = vld [vmem:[%s7 + $0x280] sm:$0xf]
    %v1448 = vld [vmem:[%s7 + $0x284] sm:$0xff]
    %v1449 = vld [vmem:[%s7 + $0x28c] sm:$0xff]
    %v1450 = vld [vmem:[%s7 + $0x294] sm:$0xff]
    %v1451 = vld [vmem:[%s7 + $0x29c] sm:$0xf]
    %v1452 = vld [vmem:[%s7 + $0x2a0] sm:$0xff]
    %v1453 = vld [vmem:[%s7 + $0x2a8] sm:$0xff]
    %v1454 = vld [vmem:[%s7 + $0x2b0] sm:$0xff]
    %v1455 = vld [vmem:[%s7 + $0x2b8] sm:$0xf]
    %v1456 = vld [vmem:[%s7 + $0x2bc] sm:$0xff]
    %v1457 = vld [vmem:[%s7 + $0x2c4] sm:$0xff]
    %v1458 = vld [vmem:[%s7 + $0x2cc] sm:$0xff]
    %v1459 = vld [vmem:[%s7 + $0x2d4] sm:$0xf]
    %v1460 = vld [vmem:[%s7 + $0x2d8] sm:$0xff]
    %v1461 = vld [vmem:[%s7 + $0x2e0] sm:$0xff]
    %v1462 = vld [vmem:[%s7 + $0x2e8] sm:$0xff]
    %v1463 = vld [vmem:[%s7 + $0x2f0] sm:$0xf]
    %v1464 = vld [vmem:[%s7 + $0x2f4] sm:$0xff]
    %v1465 = vld [vmem:[%s7 + $0x2fc] sm:$0xff]
    %v1466 = vld [vmem:[%s7 + $0x304] sm:$0xff]
    %v1467 = vld [vmem:[%s7 + $0x30c] sm:$0xf]
    %v1468 = vld [vmem:[%s7 + $0x310] sm:$0xff]
    %v1469 = vld [vmem:[%s7 + $0x318] sm:$0xff]
    %v1470 = vld [vmem:[%s7 + $0x320] sm:$0xff]
    %v1471 = vld [vmem:[%s7 + $0x328] sm:$0xf]
    %v1472 = vld [vmem:[%s7 + $0x32c] sm:$0xff]
    %v1473 = vld [vmem:[%s7 + $0x334] sm:$0xff]
    %v1474 = vld [vmem:[%s7 + $0x33c] sm:$0xff]
    %v1475 = vld [vmem:[%s7 + $0x344] sm:$0xf]
    %v1476 = vld [vmem:[%s7 + $0x348] sm:$0xff]
    %v1477 = vld [vmem:[%s7 + $0x350] sm:$0xff]
    %v1478 = vld [vmem:[%s7 + $0x358] sm:$0xff]
    %v1479 = vld [vmem:[%s7 + $0x360] sm:$0xf]
    %v1480 = vld [vmem:[%s7 + $0x364] sm:$0xff]
    %v1481 = vld [vmem:[%s7 + $0x36c] sm:$0xff]
    %v1482 = vld [vmem:[%s7 + $0x374] sm:$0xff]
    %v1483 = vld [vmem:[%s7 + $0x37c] sm:$0xf]
    %v1484 = vld [vmem:[%s8] sm:$0x7f]
    %v1486 = vlaneseq
    %v1487 = vshrl.u32 %v1486, 7
    %v1488 = vsub.s32 0, %v1487
    %v1489 = vrot.slane %v1484, %v1488
    %v1490 = vlaneseq
    %v1491 = vshrl.u32 %v1490, 7
    %v1492 = vsub.s32 1, %v1491
    %v1493 = vrot.slane %v1484, %v1492
    %v1494 = vlaneseq
    %v1495 = vshrl.u32 %v1494, 7
    %v1496 = vsub.s32 2, %v1495
    %v1497 = vrot.slane %v1484, %v1496
    %v1498 = vlaneseq
    %v1499 = vshrl.u32 %v1498, 7
    %v1500 = vsub.s32 3, %v1499
    %v1501 = vrot.slane %v1484, %v1500
    %v1502 = vlaneseq
    %v1503 = vshrl.u32 %v1502, 7
    %v1504 = vsub.s32 4, %v1503
    %v1505 = vrot.slane %v1484, %v1504
    %v1506 = vlaneseq
    %v1507 = vshrl.u32 %v1506, 7
    %v1508 = vsub.s32 5, %v1507
    %v1509 = vrot.slane %v1484, %v1508
    %v1510 = vlaneseq
    %v1511 = vshrl.u32 %v1510, 7
    %v1512 = vsub.s32 6, %v1511
    %v1513 = vrot.slane %v1484, %v1512
    %v1649 = vunpack.c.l.b16 %v1356
    %v1650 = vunpack.c.h.b16 %v1356
    %v1651 = vunpack.c.l.b16 %v1357
    %v1652 = vunpack.c.h.b16 %v1357
    %v1653 = vunpack.c.l.b16 %v1358
    %v1654 = vunpack.c.h.b16 %v1358
    %v1655 = vunpack.c.l.b16 %v1359
    %v1656 = vunpack.c.l.b16 %v1360
    %v1657 = vunpack.c.h.b16 %v1360
    %v1658 = vunpack.c.l.b16 %v1361
    %v1659 = vunpack.c.h.b16 %v1361
    %v1660 = vunpack.c.l.b16 %v1362
    %v1661 = vunpack.c.h.b16 %v1362
    %v1662 = vunpack.c.l.b16 %v1363
    %v1663 = vunpack.c.l.b16 %v1364
    %v1664 = vunpack.c.h.b16 %v1364
    %v1665 = vunpack.c.l.b16 %v1365
    %v1666 = vunpack.c.h.b16 %v1365
    %v1667 = vunpack.c.l.b16 %v1366
    %v1668 = vunpack.c.h.b16 %v1366
    %v1669 = vunpack.c.l.b16 %v1367
    %v1670 = vunpack.c.l.b16 %v1368
    %v1671 = vunpack.c.h.b16 %v1368
    %v1672 = vunpack.c.l.b16 %v1369
    %v1673 = vunpack.c.h.b16 %v1369
    %v1674 = vunpack.c.l.b16 %v1370
    %v1675 = vunpack.c.h.b16 %v1370
    %v1676 = vunpack.c.l.b16 %v1371
    %v1677 = vunpack.c.l.b16 %v1372
    %v1678 = vunpack.c.h.b16 %v1372
    %v1679 = vunpack.c.l.b16 %v1373
    %v1680 = vunpack.c.h.b16 %v1373
    %v1681 = vunpack.c.l.b16 %v1374
    %v1682 = vunpack.c.h.b16 %v1374
    %v1683 = vunpack.c.l.b16 %v1375
    %v1684 = vunpack.c.l.b16 %v1376
    %v1685 = vunpack.c.h.b16 %v1376
    %v1686 = vunpack.c.l.b16 %v1377
    %v1687 = vunpack.c.h.b16 %v1377
    %v1688 = vunpack.c.l.b16 %v1378
    %v1689 = vunpack.c.h.b16 %v1378
    %v1690 = vunpack.c.l.b16 %v1379
    %v1691 = vunpack.c.l.b16 %v1380
    %v1692 = vunpack.c.h.b16 %v1380
    %v1693 = vunpack.c.l.b16 %v1381
    %v1694 = vunpack.c.h.b16 %v1381
    %v1695 = vunpack.c.l.b16 %v1382
    %v1696 = vunpack.c.h.b16 %v1382
    %v1697 = vunpack.c.l.b16 %v1383
    %v1698 = vunpack.c.l.b16 %v1384
    %v1699 = vunpack.c.h.b16 %v1384
    %v1700 = vunpack.c.l.b16 %v1385
    %v1701 = vunpack.c.h.b16 %v1385
    %v1702 = vunpack.c.l.b16 %v1386
    %v1703 = vunpack.c.h.b16 %v1386
    %v1704 = vunpack.c.l.b16 %v1387
    %v1705 = vunpack.c.l.b16 %v1388
    %v1706 = vunpack.c.h.b16 %v1388
    %v1707 = vunpack.c.l.b16 %v1389
    %v1708 = vunpack.c.h.b16 %v1389
    %v1709 = vunpack.c.l.b16 %v1390
    %v1710 = vunpack.c.h.b16 %v1390
    %v1711 = vunpack.c.l.b16 %v1391
    %v1712 = vunpack.c.l.b16 %v1392
    %v1713 = vunpack.c.h.b16 %v1392
    %v1714 = vunpack.c.l.b16 %v1393
    %v1715 = vunpack.c.h.b16 %v1393
    %v1716 = vunpack.c.l.b16 %v1394
    %v1717 = vunpack.c.h.b16 %v1394
    %v1718 = vunpack.c.l.b16 %v1395
    %v1719 = vunpack.c.l.b16 %v1396
    %v1720 = vunpack.c.h.b16 %v1396
    %v1721 = vunpack.c.l.b16 %v1397
    %v1722 = vunpack.c.h.b16 %v1397
    %v1723 = vunpack.c.l.b16 %v1398
    %v1724 = vunpack.c.h.b16 %v1398
    %v1725 = vunpack.c.l.b16 %v1399
    %v1726 = vunpack.c.l.b16 %v1400
    %v1727 = vunpack.c.h.b16 %v1400
    %v1728 = vunpack.c.l.b16 %v1401
    %v1729 = vunpack.c.h.b16 %v1401
    %v1730 = vunpack.c.l.b16 %v1402
    %v1731 = vunpack.c.h.b16 %v1402
    %v1732 = vunpack.c.l.b16 %v1403
    %v1733 = vunpack.c.l.b16 %v1404
    %v1734 = vunpack.c.h.b16 %v1404
    %v1735 = vunpack.c.l.b16 %v1405
    %v1736 = vunpack.c.h.b16 %v1405
    %v1737 = vunpack.c.l.b16 %v1406
    %v1738 = vunpack.c.h.b16 %v1406
    %v1739 = vunpack.c.l.b16 %v1407
    %v1740 = vunpack.c.l.b16 %v1408
    %v1741 = vunpack.c.h.b16 %v1408
    %v1742 = vunpack.c.l.b16 %v1409
    %v1743 = vunpack.c.h.b16 %v1409
    %v1744 = vunpack.c.l.b16 %v1410
    %v1745 = vunpack.c.h.b16 %v1410
    %v1746 = vunpack.c.l.b16 %v1411
    %v1747 = vunpack.c.l.b16 %v1412
    %v1748 = vunpack.c.h.b16 %v1412
    %v1749 = vunpack.c.l.b16 %v1413
    %v1750 = vunpack.c.h.b16 %v1413
    %v1751 = vunpack.c.l.b16 %v1414
    %v1752 = vunpack.c.h.b16 %v1414
    %v1753 = vunpack.c.l.b16 %v1415
    %v1754 = vunpack.c.l.b16 %v1416
    %v1755 = vunpack.c.h.b16 %v1416
    %v1756 = vunpack.c.l.b16 %v1417
    %v1757 = vunpack.c.h.b16 %v1417
    %v1758 = vunpack.c.l.b16 %v1418
    %v1759 = vunpack.c.h.b16 %v1418
    %v1760 = vunpack.c.l.b16 %v1419
    %v1761 = vunpack.c.l.b16 %v1420
    %v1762 = vunpack.c.h.b16 %v1420
    %v1763 = vunpack.c.l.b16 %v1421
    %v1764 = vunpack.c.h.b16 %v1421
    %v1765 = vunpack.c.l.b16 %v1422
    %v1766 = vunpack.c.h.b16 %v1422
    %v1767 = vunpack.c.l.b16 %v1423
    %v1768 = vunpack.c.l.b16 %v1424
    %v1769 = vunpack.c.h.b16 %v1424
    %v1770 = vunpack.c.l.b16 %v1425
    %v1771 = vunpack.c.h.b16 %v1425
    %v1772 = vunpack.c.l.b16 %v1426
    %v1773 = vunpack.c.h.b16 %v1426
    %v1774 = vunpack.c.l.b16 %v1427
    %v1775 = vunpack.c.l.b16 %v1428
    %v1776 = vunpack.c.h.b16 %v1428
    %v1777 = vunpack.c.l.b16 %v1429
    %v1778 = vunpack.c.h.b16 %v1429
    %v1779 = vunpack.c.l.b16 %v1430
    %v1780 = vunpack.c.h.b16 %v1430
    %v1781 = vunpack.c.l.b16 %v1431
    %v1782 = vunpack.c.l.b16 %v1432
    %v1783 = vunpack.c.h.b16 %v1432
    %v1784 = vunpack.c.l.b16 %v1433
    %v1785 = vunpack.c.h.b16 %v1433
    %v1786 = vunpack.c.l.b16 %v1434
    %v1787 = vunpack.c.h.b16 %v1434
    %v1788 = vunpack.c.l.b16 %v1435
    %v1789 = vunpack.c.l.b16 %v1436
    %v1790 = vunpack.c.h.b16 %v1436
    %v1791 = vunpack.c.l.b16 %v1437
    %v1792 = vunpack.c.h.b16 %v1437
    %v1793 = vunpack.c.l.b16 %v1438
    %v1794 = vunpack.c.h.b16 %v1438
    %v1795 = vunpack.c.l.b16 %v1439
    %v1796 = vunpack.c.l.b16 %v1440
    %v1797 = vunpack.c.h.b16 %v1440
    %v1798 = vunpack.c.l.b16 %v1441
    %v1799 = vunpack.c.h.b16 %v1441
    %v1800 = vunpack.c.l.b16 %v1442
    %v1801 = vunpack.c.h.b16 %v1442
    %v1802 = vunpack.c.l.b16 %v1443
    %v1803 = vunpack.c.l.b16 %v1444
    %v1804 = vunpack.c.h.b16 %v1444
    %v1805 = vunpack.c.l.b16 %v1445
    %v1806 = vunpack.c.h.b16 %v1445
    %v1807 = vunpack.c.l.b16 %v1446
    %v1808 = vunpack.c.h.b16 %v1446
    %v1809 = vunpack.c.l.b16 %v1447
    %v1810 = vunpack.c.l.b16 %v1448
    %v1811 = vunpack.c.h.b16 %v1448
    %v1812 = vunpack.c.l.b16 %v1449
    %v1813 = vunpack.c.h.b16 %v1449
    %v1814 = vunpack.c.l.b16 %v1450
    %v1815 = vunpack.c.h.b16 %v1450
    %v1816 = vunpack.c.l.b16 %v1451
    %v1817 = vunpack.c.l.b16 %v1452
    %v1818 = vunpack.c.h.b16 %v1452
    %v1819 = vunpack.c.l.b16 %v1453
    %v1820 = vunpack.c.h.b16 %v1453
    %v1821 = vunpack.c.l.b16 %v1454
    %v1822 = vunpack.c.h.b16 %v1454
    %v1823 = vunpack.c.l.b16 %v1455
    %v1824 = vunpack.c.l.b16 %v1456
    %v1825 = vunpack.c.h.b16 %v1456
    %v1826 = vunpack.c.l.b16 %v1457
    %v1827 = vunpack.c.h.b16 %v1457
    %v1828 = vunpack.c.l.b16 %v1458
    %v1829 = vunpack.c.h.b16 %v1458
    %v1830 = vunpack.c.l.b16 %v1459
    %v1831 = vunpack.c.l.b16 %v1460
    %v1832 = vunpack.c.h.b16 %v1460
    %v1833 = vunpack.c.l.b16 %v1461
    %v1834 = vunpack.c.h.b16 %v1461
    %v1835 = vunpack.c.l.b16 %v1462
    %v1836 = vunpack.c.h.b16 %v1462
    %v1837 = vunpack.c.l.b16 %v1463
    %v1838 = vunpack.c.l.b16 %v1464
    %v1839 = vunpack.c.h.b16 %v1464
    %v1840 = vunpack.c.l.b16 %v1465
    %v1841 = vunpack.c.h.b16 %v1465
    %v1842 = vunpack.c.l.b16 %v1466
    %v1843 = vunpack.c.h.b16 %v1466
    %v1844 = vunpack.c.l.b16 %v1467
    %v1845 = vunpack.c.l.b16 %v1468
    %v1846 = vunpack.c.h.b16 %v1468
    %v1847 = vunpack.c.l.b16 %v1469
    %v1848 = vunpack.c.h.b16 %v1469
    %v1849 = vunpack.c.l.b16 %v1470
    %v1850 = vunpack.c.h.b16 %v1470
    %v1851 = vunpack.c.l.b16 %v1471
    %v1852 = vunpack.c.l.b16 %v1472
    %v1853 = vunpack.c.h.b16 %v1472
    %v1854 = vunpack.c.l.b16 %v1473
    %v1855 = vunpack.c.h.b16 %v1473
    %v1856 = vunpack.c.l.b16 %v1474
    %v1857 = vunpack.c.h.b16 %v1474
    %v1858 = vunpack.c.l.b16 %v1475
    %v1859 = vunpack.c.l.b16 %v1476
    %v1860 = vunpack.c.h.b16 %v1476
    %v1861 = vunpack.c.l.b16 %v1477
    %v1862 = vunpack.c.h.b16 %v1477
    %v1863 = vunpack.c.l.b16 %v1478
    %v1864 = vunpack.c.h.b16 %v1478
    %v1865 = vunpack.c.l.b16 %v1479
    %v1866 = vunpack.c.l.b16 %v1480
    %v1867 = vunpack.c.h.b16 %v1480
    %v1868 = vunpack.c.l.b16 %v1481
    %v1869 = vunpack.c.h.b16 %v1481
    %v1870 = vunpack.c.l.b16 %v1482
    %v1871 = vunpack.c.h.b16 %v1482
    %v1872 = vunpack.c.l.b16 %v1483
    %v1873 = vpack.c.b16 %v1656, %v1649
    %v1874 = vpack.c.b16 %v1657, %v1650
    %v1875 = vpack.c.b16 %v1658, %v1651
    %v1876 = vpack.c.b16 %v1659, %v1652
    %v1877 = vpack.c.b16 %v1660, %v1653
    %v1878 = vpack.c.b16 %v1661, %v1654
    %v1879 = vpack.c.b16 %v1662, %v1655
    %v1880 = vpack.c.b16 %v1670, %v1663
    %v1881 = vpack.c.b16 %v1671, %v1664
    %v1882 = vpack.c.b16 %v1672, %v1665
    %v1883 = vpack.c.b16 %v1673, %v1666
    %v1884 = vpack.c.b16 %v1674, %v1667
    %v1885 = vpack.c.b16 %v1675, %v1668
    %v1886 = vpack.c.b16 %v1676, %v1669
    %v1887 = vpack.c.b16 %v1684, %v1677
    %v1888 = vpack.c.b16 %v1685, %v1678
    %v1889 = vpack.c.b16 %v1686, %v1679
    %v1890 = vpack.c.b16 %v1687, %v1680
    %v1891 = vpack.c.b16 %v1688, %v1681
    %v1892 = vpack.c.b16 %v1689, %v1682
    %v1893 = vpack.c.b16 %v1690, %v1683
    %v1894 = vpack.c.b16 %v1698, %v1691
    %v1895 = vpack.c.b16 %v1699, %v1692
    %v1896 = vpack.c.b16 %v1700, %v1693
    %v1897 = vpack.c.b16 %v1701, %v1694
    %v1898 = vpack.c.b16 %v1702, %v1695
    %v1899 = vpack.c.b16 %v1703, %v1696
    %v1900 = vpack.c.b16 %v1704, %v1697
    %v1901 = vpack.c.b16 %v1712, %v1705
    %v1902 = vpack.c.b16 %v1713, %v1706
    %v1903 = vpack.c.b16 %v1714, %v1707
    %v1904 = vpack.c.b16 %v1715, %v1708
    %v1905 = vpack.c.b16 %v1716, %v1709
    %v1906 = vpack.c.b16 %v1717, %v1710
    %v1907 = vpack.c.b16 %v1718, %v1711
    %v1908 = vpack.c.b16 %v1726, %v1719
    %v1909 = vpack.c.b16 %v1727, %v1720
    %v1910 = vpack.c.b16 %v1728, %v1721
    %v1911 = vpack.c.b16 %v1729, %v1722
    %v1912 = vpack.c.b16 %v1730, %v1723
    %v1913 = vpack.c.b16 %v1731, %v1724
    %v1914 = vpack.c.b16 %v1732, %v1725
    %v1915 = vpack.c.b16 %v1740, %v1733
    %v1916 = vpack.c.b16 %v1741, %v1734
    %v1917 = vpack.c.b16 %v1742, %v1735
    %v1918 = vpack.c.b16 %v1743, %v1736
    %v1919 = vpack.c.b16 %v1744, %v1737
    %v1920 = vpack.c.b16 %v1745, %v1738
    %v1921 = vpack.c.b16 %v1746, %v1739
    %v1922 = vpack.c.b16 %v1754, %v1747
    %v1923 = vpack.c.b16 %v1755, %v1748
    %v1924 = vpack.c.b16 %v1756, %v1749
    %v1925 = vpack.c.b16 %v1757, %v1750
    %v1926 = vpack.c.b16 %v1758, %v1751
    %v1927 = vpack.c.b16 %v1759, %v1752
    %v1928 = vpack.c.b16 %v1760, %v1753
    %v1929 = vpack.c.b16 %v1768, %v1761
    %v1930 = vpack.c.b16 %v1769, %v1762
    %v1931 = vpack.c.b16 %v1770, %v1763
    %v1932 = vpack.c.b16 %v1771, %v1764
    %v1933 = vpack.c.b16 %v1772, %v1765
    %v1934 = vpack.c.b16 %v1773, %v1766
    %v1935 = vpack.c.b16 %v1774, %v1767
    %v1936 = vpack.c.b16 %v1782, %v1775
    %v1937 = vpack.c.b16 %v1783, %v1776
    %v1938 = vpack.c.b16 %v1784, %v1777
    %v1939 = vpack.c.b16 %v1785, %v1778
    %v1940 = vpack.c.b16 %v1786, %v1779
    %v1941 = vpack.c.b16 %v1787, %v1780
    %v1942 = vpack.c.b16 %v1788, %v1781
    %v1943 = vpack.c.b16 %v1796, %v1789
    %v1944 = vpack.c.b16 %v1797, %v1790
    %v1945 = vpack.c.b16 %v1798, %v1791
    %v1946 = vpack.c.b16 %v1799, %v1792
    %v1947 = vpack.c.b16 %v1800, %v1793
    %v1948 = vpack.c.b16 %v1801, %v1794
    %v1949 = vpack.c.b16 %v1802, %v1795
    %v1950 = vpack.c.b16 %v1810, %v1803
    %v1951 = vpack.c.b16 %v1811, %v1804
    %v1952 = vpack.c.b16 %v1812, %v1805
    %v1953 = vpack.c.b16 %v1813, %v1806
    %v1954 = vpack.c.b16 %v1814, %v1807
    %v1955 = vpack.c.b16 %v1815, %v1808
    %v1956 = vpack.c.b16 %v1816, %v1809
    %v1957 = vpack.c.b16 %v1824, %v1817
    %v1958 = vpack.c.b16 %v1825, %v1818
    %v1959 = vpack.c.b16 %v1826, %v1819
    %v1960 = vpack.c.b16 %v1827, %v1820
    %v1961 = vpack.c.b16 %v1828, %v1821
    %v1962 = vpack.c.b16 %v1829, %v1822
    %v1963 = vpack.c.b16 %v1830, %v1823
    %v1964 = vpack.c.b16 %v1838, %v1831
    %v1965 = vpack.c.b16 %v1839, %v1832
    %v1966 = vpack.c.b16 %v1840, %v1833
    %v1967 = vpack.c.b16 %v1841, %v1834
    %v1968 = vpack.c.b16 %v1842, %v1835
    %v1969 = vpack.c.b16 %v1843, %v1836
    %v1970 = vpack.c.b16 %v1844, %v1837
    %v1971 = vpack.c.b16 %v1852, %v1845
    %v1972 = vpack.c.b16 %v1853, %v1846
    %v1973 = vpack.c.b16 %v1854, %v1847
    %v1974 = vpack.c.b16 %v1855, %v1848
    %v1975 = vpack.c.b16 %v1856, %v1849
    %v1976 = vpack.c.b16 %v1857, %v1850
    %v1977 = vpack.c.b16 %v1858, %v1851
    %v1978 = vpack.c.b16 %v1866, %v1859
    %v1979 = vpack.c.b16 %v1867, %v1860
    %v1980 = vpack.c.b16 %v1868, %v1861
    %v1981 = vpack.c.b16 %v1869, %v1862
    %v1982 = vpack.c.b16 %v1870, %v1863
    %v1983 = vpack.c.b16 %v1871, %v1864
    %v1984 = vpack.c.b16 %v1872, %v1865
    %2097 = vmatprep.subr.bf16.mxu0 %v1874
    %2098 = vmatpush1.bf16.msra.mxu0 %v1873
    %2099 = vmatprep.subr.bf16.mxu0 %v1881
    %2100 = vmatpush1.bf16.msra.mxu0 %v1880
    %2101 = vmatprep.subr.bf16.mxu0 %v1888
    %2102 = vmatpush1.bf16.msra.mxu0 %v1887
    %2103 = vmatprep.subr.bf16.mxu0 %v1895
    %2104 = vmatpush1.bf16.msra.mxu0 %v1894
    %2105 = vmatprep.subr.bf16.mxu0 %v1902
    %2106 = vmatpush1.bf16.msra.mxu0 %v1901
    %2107 = vmatprep.subr.bf16.mxu0 %v1909
    %2108 = vmatpush1.bf16.msra.mxu0 %v1908
    %2109 = vmatprep.subr.bf16.mxu0 %v1916
    %2110 = vmatpush1.bf16.msra.mxu0 %v1915
    %2111 = vmatprep.subr.bf16.mxu0 %v1923
    %2112 = vmatpush1.bf16.msra.mxu0 %v1922
    %2113 = vmatprep.subr.bf16.mxu0 %v1930
    %2114 = vmatpush1.bf16.msra.mxu0 %v1929
    %2115 = vmatprep.subr.bf16.mxu0 %v1937
    %2116 = vmatpush1.bf16.msra.mxu0 %v1936
    %2117 = vmatprep.subr.bf16.mxu0 %v1944
    %2118 = vmatpush1.bf16.msra.mxu0 %v1943
    %2119 = vmatprep.subr.bf16.mxu0 %v1951
    %2120 = vmatpush1.bf16.msra.mxu0 %v1950
    %2121 = vmatprep.subr.bf16.mxu0 %v1958
    %2122 = vmatpush1.bf16.msra.mxu0 %v1957
    %2123 = vmatprep.subr.bf16.mxu0 %v1965
    %2124 = vmatpush1.bf16.msra.mxu0 %v1964
    %2125 = vmatprep.subr.bf16.mxu0 %v1972
    %2126 = vmatpush1.bf16.msra.mxu0 %v1971
    %2127 = vmatprep.subr.bf16.mxu0 %v1979
    %2128 = vmatpush1.bf16.msra.mxu0 %v1978
    %2129 = vmatprep.mubr.bf16.mxu0 %v1355
    %2130 = vmatmul.mubr.bf16.gmra.mrb[0].mxu0 %v1354
    %v2131 = vpop.f32.mrb[0].mxu0
    %v2132 = vadd.f32 %v1489, %v2131
    %v2133 = vpop.f32.mrb[0].mxu0
    %v2134 = vadd.f32 %v1493, %v2133
    %v2135 = vpop.f32.mrb[0].mxu0
    %v2136 = vpop.f32.mrb[0].mxu0
    %2137 = vdwg.mxu0
    %2138 = vmatprep.subr.bf16.mxu0 %v1876
    %2139 = vmatpush1.bf16.msra.mxu0 %v1875
    %2140 = vmatprep.subr.bf16.mxu0 %v1883
    %2141 = vmatpush1.bf16.msra.mxu0 %v1882
    %2142 = vmatprep.subr.bf16.mxu0 %v1890
    %2143 = vmatpush1.bf16.msra.mxu0 %v1889
    %2144 = vmatprep.subr.bf16.mxu0 %v1897
    %2145 = vmatpush1.bf16.msra.mxu0 %v1896
    %2146 = vmatprep.subr.bf16.mxu0 %v1904
    %2147 = vmatpush1.bf16.msra.mxu0 %v1903
    %2148 = vmatprep.subr.bf16.mxu0 %v1911
    %2149 = vmatpush1.bf16.msra.mxu0 %v1910
    %2150 = vmatprep.subr.bf16.mxu0 %v1918
    %2151 = vmatpush1.bf16.msra.mxu0 %v1917
    %2152 = vmatprep.subr.bf16.mxu0 %v1925
    %2153 = vmatpush1.bf16.msra.mxu0 %v1924
    %2154 = vmatprep.subr.bf16.mxu0 %v1932
    %2155 = vmatpush1.bf16.msra.mxu0 %v1931
    %2156 = vmatprep.subr.bf16.mxu0 %v1939
    %2157 = vmatpush1.bf16.msra.mxu0 %v1938
    %2158 = vmatprep.subr.bf16.mxu0 %v1946
    %2159 = vmatpush1.bf16.msra.mxu0 %v1945
    %2160 = vmatprep.subr.bf16.mxu0 %v1953
    %2161 = vmatpush1.bf16.msra.mxu0 %v1952
    %2162 = vmatprep.subr.bf16.mxu0 %v1960
    %2163 = vmatpush1.bf16.msra.mxu0 %v1959
    %2164 = vmatprep.subr.bf16.mxu0 %v1967
    %2165 = vmatpush1.bf16.msra.mxu0 %v1966
    %2166 = vmatprep.subr.bf16.mxu0 %v1974
    %2167 = vmatpush1.bf16.msra.mxu0 %v1973
    %2168 = vmatprep.subr.bf16.mxu0 %v1981
    %2169 = vmatpush1.bf16.msra.mxu0 %v1980
    %2170 = vmatprep.mubr.bf16.mxu0 %v1355
    %2171 = vmatmul.mubr.bf16.gmra.mrb[0].mxu0 %v1354
    %v2172 = vpop.f32.mrb[0].mxu0
    %v2173 = vadd.f32 %v1497, %v2172
    %v2174 = vpop.f32.mrb[0].mxu0
    %v2175 = vadd.f32 %v1501, %v2174
    %v2176 = vpop.f32.mrb[0].mxu0
    %v2177 = vpop.f32.mrb[0].mxu0
    %2178 = vdwg.mxu0
    %2179 = vmatprep.subr.bf16.mxu0 %v1878
    %2180 = vmatpush1.bf16.msra.mxu0 %v1877
    %2181 = vmatprep.subr.bf16.mxu0 %v1885
    %2182 = vmatpush1.bf16.msra.mxu0 %v1884
    %2183 = vmatprep.subr.bf16.mxu0 %v1892
    %2184 = vmatpush1.bf16.msra.mxu0 %v1891
    %2185 = vmatprep.subr.bf16.mxu0 %v1899
    %2186 = vmatpush1.bf16.msra.mxu0 %v1898
    %2187 = vmatprep.subr.bf16.mxu0 %v1906
    %2188 = vmatpush1.bf16.msra.mxu0 %v1905
    %2189 = vmatprep.subr.bf16.mxu0 %v1913
    %2190 = vmatpush1.bf16.msra.mxu0 %v1912
    %2191 = vmatprep.subr.bf16.mxu0 %v1920
    %2192 = vmatpush1.bf16.msra.mxu0 %v1919
    %2193 = vmatprep.subr.bf16.mxu0 %v1927
    %2194 = vmatpush1.bf16.msra.mxu0 %v1926
    %2195 = vmatprep.subr.bf16.mxu0 %v1934
    %2196 = vmatpush1.bf16.msra.mxu0 %v1933
    %2197 = vmatprep.subr.bf16.mxu0 %v1941
    %2198 = vmatpush1.bf16.msra.mxu0 %v1940
    %2199 = vmatprep.subr.bf16.mxu0 %v1948
    %2200 = vmatpush1.bf16.msra.mxu0 %v1947
    %2201 = vmatprep.subr.bf16.mxu0 %v1955
    %2202 = vmatpush1.bf16.msra.mxu0 %v1954
    %2203 = vmatprep.subr.bf16.mxu0 %v1962
    %2204 = vmatpush1.bf16.msra.mxu0 %v1961
    %2205 = vmatprep.subr.bf16.mxu0 %v1969
    %2206 = vmatpush1.bf16.msra.mxu0 %v1968
    %2207 = vmatprep.subr.bf16.mxu0 %v1976
    %2208 = vmatpush1.bf16.msra.mxu0 %v1975
    %2209 = vmatprep.subr.bf16.mxu0 %v1983
    %2210 = vmatpush1.bf16.msra.mxu0 %v1982
    %2211 = vmatprep.mubr.bf16.mxu0 %v1355
    %2212 = vmatmul.mubr.bf16.gmra.mrb[0].mxu0 %v1354
    %v2213 = vpop.f32.mrb[0].mxu0
    %v2214 = vadd.f32 %v1505, %v2213
    %v2215 = vpop.f32.mrb[0].mxu0
    %v2216 = vadd.f32 %v1509, %v2215
    %v2217 = vpop.f32.mrb[0].mxu0
    %v2218 = vpop.f32.mrb[0].mxu0
    %2219 = vdwg.mxu0
    %2220 = vmatprep.subr.bf16.mxu0 0
    %2221 = vmatpush1.bf16.msra.mxu0 %v1879
    %2222 = vmatprep.subr.bf16.mxu0 0
    %2223 = vmatpush1.bf16.msra.mxu0 %v1886
    %2224 = vmatprep.subr.bf16.mxu0 0
    %2225 = vmatpush1.bf16.msra.mxu0 %v1893
    %2226 = vmatprep.subr.bf16.mxu0 0
    %2227 = vmatpush1.bf16.msra.mxu0 %v1900
    %2228 = vmatprep.subr.bf16.mxu0 0
    %2229 = vmatpush1.bf16.msra.mxu0 %v1907
    %2230 = vmatprep.subr.bf16.mxu0 0
    %2231 = vmatpush1.bf16.msra.mxu0 %v1914
    %2232 = vmatprep.subr.bf16.mxu0 0
    %2233 = vmatpush1.bf16.msra.mxu0 %v1921
    %2234 = vmatprep.subr.bf16.mxu0 0
    %2235 = vmatpush1.bf16.msra.mxu0 %v1928
    %2236 = vmatprep.subr.bf16.mxu0 0
    %2237 = vmatpush1.bf16.msra.mxu0 %v1935
    %2238 = vmatprep.subr.bf16.mxu0 0
    %2239 = vmatpush1.bf16.msra.mxu0 %v1942
    %2240 = vmatprep.subr.bf16.mxu0 0
    %2241 = vmatpush1.bf16.msra.mxu0 %v1949
    %2242 = vmatprep.subr.bf16.mxu0 0
    %2243 = vmatpush1.bf16.msra.mxu0 %v1956
    %2244 = vmatprep.subr.bf16.mxu0 0
    %2245 = vmatpush1.bf16.msra.mxu0 %v1963
    %2246 = vmatprep.subr.bf16.mxu0 0
    %2247 = vmatpush1.bf16.msra.mxu0 %v1970
    %2248 = vmatprep.subr.bf16.mxu0 0
    %2249 = vmatpush1.bf16.msra.mxu0 %v1977
    %2250 = vmatprep.subr.bf16.mxu0 0
    %2251 = vmatpush1.bf16.msra.mxu0 %v1984
    %2252 = vmatprep.mubr.bf16.mxu0 %v1355
    %2253 = vmatmul.mubr.bf16.gmra.mrb[0].mxu0 %v1354
    %v2254 = vpop.f32.mrb[0].mxu0
    %v2255 = vadd.f32 %v1513, %v2254
    %v2256 = vpop.f32.mrb[0].mxu0
    %v2257 = vpop.f32.mrb[0].mxu0
    %v2258 = vpop.f32.mrb[0].mxu0
    %2259 = vdwg.mxu0
    %v2260 = vmul.f32 %v2132, 0.5
    %v2261 = vmul.f32 %v2134, 0.5
    %v2262 = vmul.f32 %v2173, 0.5
    %v2263 = vmul.f32 %v2175, 0.5
    %v2264 = vmul.f32 %v2214, 0.5
    %v2265 = vmul.f32 %v2216, 0.5
    %v2266 = vmul.f32 %v2255, 0.5
    %v2267 = vtanh.pop %v2260
    %v2268 = vtanh.pop %v2261
    %v2269 = vtanh.pop %v2262
    %v2270 = vtanh.pop %v2263
    %v2271 = vtanh.pop %v2264
    %v2272 = vtanh.pop %v2265
    %v2273 = vtanh.pop %v2266
    %v2274 = vadd.f32 %v2267, 1.0
    %v2275 = vadd.f32 %v2268, 1.0
    %v2276 = vadd.f32 %v2269, 1.0
    %v2277 = vadd.f32 %v2270, 1.0
    %v2278 = vadd.f32 %v2271, 1.0
    %v2279 = vadd.f32 %v2272, 1.0
    %v2280 = vadd.f32 %v2273, 1.0
    %v2281 = vmul.f32 %v2274, 0.5
    %v2282 = vmul.f32 %v2275, 0.5
    %v2283 = vmul.f32 %v2276, 0.5
    %v2284 = vmul.f32 %v2277, 0.5
    %v2285 = vmul.f32 %v2278, 0.5
    %v2286 = vmul.f32 %v2279, 0.5
    %v2287 = vmul.f32 %v2280, 0.5
    %2288 = vst [vmem:[#allocation2] sm:$0xff] %v2281
    %2289 = vst [vmem:[#allocation2 + $0x8] sm:$0xff] %v2282
    %2290 = vst [vmem:[#allocation2 + $0x10] sm:$0xff] %v2283
    %2291 = vst [vmem:[#allocation2 + $0x18] sm:$0xff] %v2284
    %2292 = vst [vmem:[#allocation2 + $0x20] sm:$0xff] %v2285
    %2293 = vst [vmem:[#allocation2 + $0x28] sm:$0xff] %v2286
    %2294 = vst.msk [vmem:[#allocation2 + $0x30] sm:$0xff] %vm652, %v2287
    // Predicated region
    $region38: #{autoencoder_forward.1} parent=1 // pred_check
      _
    $region39: #{autoencoder_forward.1} parent=1 // pred_check_branch
      %2296 = sbr.rel (0) target = $region41
    $region40: #{autoencoder_forward.1} parent=1 // pred_region
      %s2298 = ssub.s32 896, 896
      %2299 = vsyncadd [#allocation3], %s2298
      %s2301 = sshll.u32 [#allocation2], 4
      %s2302 = int_to_ptr.vmem [resolvable:$true] %s2301
      %2304 = dma.vmem_to_hbm [thread:$0]  %s2302, 896, %s9, [#allocation3]
    $region41: #{autoencoder_forward.1} parent=1 // pred_fallthru
      _
    // Predicated region
    $region42: #{autoencoder_forward.1} parent=1 // pred_check
      _
    $region43: #{autoencoder_forward.1} parent=1 // pred_check_branch
      %2306 = sbr.rel (0) target = $region45
    $region44: #{autoencoder_forward.1} parent=1 // pred_region
      %s2308 = ssub.s32 128, 128
      %2309 = vsyncadd [#allocation5], %s2308
      %s2311 = sshll.u32 [#allocation4], 4
      %s2312 = int_to_ptr.vmem [resolvable:$true] %s2311
      %2314 = dma.vmem_to_hbm [thread:$0]  %s2312, 128, %s10, [#allocation5]
    $region45: #{autoencoder_forward.1} parent=1 // pred_fallthru
      _
    // Predicated region
    $region46: #{autoencoder_forward.1} parent=1 // pred_check
      _
    $region47: #{autoencoder_forward.1} parent=1 // pred_check_branch
      %2316 = sbr.rel (0) target = $region49
    $region48: #{autoencoder_forward.1} parent=1 // pred_region
      %s2318 = ssub.s32 128, 128
      %2319 = vsyncadd [#allocation5], %s2318
      %s2321 = sshll.u32 [#allocation6], 4
      %s2322 = int_to_ptr.vmem [resolvable:$true] %s2321
      %2324 = dma.vmem_to_hbm [thread:$0]  %s2322, 128, %s11, [#allocation5]
    $region49: #{autoencoder_forward.1} parent=1 // pred_fallthru
      _
    // Predicated region
    $region50: #{autoencoder_forward.1} parent=1 // pred_check
      _
    $region51: #{autoencoder_forward.1} parent=1 // pred_check_branch
      %2326 = sbr.rel (0) target = $region53
    $region52: #{autoencoder_forward.1} parent=1 // pred_region
      %2327 = dma.done [#allocation3], 896
    $region53: #{autoencoder_forward.1} parent=1 // pred_fallthru
      _
    // Predicated region
    $region54: #{autoencoder_forward.1} parent=1 // pred_check
      _
    $region55: #{autoencoder_forward.1} parent=1 // pred_check_branch
      %2329 = sbr.rel (0) target = $region57
    $region56: #{autoencoder_forward.1} parent=1 // pred_region
      %2330 = dma.done [#allocation5], 128
    $region57: #{autoencoder_forward.1} parent=1 // pred_fallthru
      _
    // Predicated region
    $region58: #{autoencoder_forward.1} parent=1 // pred_check
      _
    $region59: #{autoencoder_forward.1} parent=1 // pred_check_branch
      %2332 = sbr.rel (0) target = $region61
    $region60: #{autoencoder_forward.1} parent=1 // pred_region
      %2333 = dma.done [#allocation5], 128
    $region61: #{autoencoder_forward.1} parent=1 // pred_fallthru
      _
    %2334 = vsyncpa [#allocation3], 1
    %2335 = vsyncpa [#allocation5], 1

</llo_original>
